<compile_context>
chip_gen: v6e
topology: v6e:2x2x1
jax: 0.10.0
libtpu: 0.0.40
codegen_flags: <defaults>
</compile_context>

<pallas_src>
import functools
import math

import jax
import jax.numpy as jnp
from jax.experimental import pallas as pl
from jax.experimental.pallas import tpu as pltpu


def _round_up(x: int, m: int) -> int:
    return ((x + m - 1) // m) * m


# ---------------------------------------------------------------------------
# Pallas kernel: one LightGCN propagation layer, fused with the running sum.
#
#   new_emb = Graph @ emb                       (bf16 out, f32 MXU accumulate)
#   acc_out = (acc_in + Graph @ emb) * scale    (f32)
#
# Grid = (row tiles, k tiles); k is the contraction axis ("arbitrary").
# ---------------------------------------------------------------------------
def _propagate_kernel(g_ref, e_ref, acc_in_ref, new_ref, acc_out_ref,
                      acc_scratch, *, out_scale):
    k = pl.program_id(1)

    @pl.when(k == 0)
    def _init():
        acc_scratch[...] = jnp.zeros_like(acc_scratch)

    # bf16 x bf16 -> f32 on the MXU.
    acc_scratch[...] += jnp.dot(g_ref[...], e_ref[...],
                                preferred_element_type=jnp.float32)

    @pl.when(k == pl.num_programs(1) - 1)
    def _finalize():
        layer_out = acc_scratch[...]
        new_ref[...] = layer_out.astype(new_ref.dtype)
        acc_out_ref[...] = (acc_in_ref[...] + layer_out) * out_scale


def graph_propagate(graph_bf16, emb_bf16, acc_f32, *, tm, tk, out_scale=1.0):
    """One propagation layer: returns (new_emb_bf16, acc_out_f32)."""
    n_pad = graph_bf16.shape[0]
    d = emb_bf16.shape[1]
    assert n_pad % tm == 0 and n_pad % tk == 0

    return pl.pallas_call(
        functools.partial(_propagate_kernel, out_scale=float(out_scale)),
        out_shape=(
            jax.ShapeDtypeStruct((n_pad, d), jnp.bfloat16),   # new embedding
            jax.ShapeDtypeStruct((n_pad, d), jnp.float32),    # running sum
        ),
        grid_spec=pltpu.PrefetchScalarGridSpec(
            num_scalar_prefetch=0,
            grid=(n_pad // tm, n_pad // tk),
            in_specs=[
                pl.BlockSpec((tm, tk), lambda i, k: (i, k)),  # graph tile
                pl.BlockSpec((tk, d), lambda i, k: (k, 0)),   # emb k-slab
                pl.BlockSpec((tm, d), lambda i, k: (i, 0)),   # prev acc tile
            ],
            out_specs=[
                pl.BlockSpec((tm, d), lambda i, k: (i, 0)),
                pl.BlockSpec((tm, d), lambda i, k: (i, 0)),
            ],
            scratch_shapes=[pltpu.VMEM((tm, d), jnp.float32)],
        ),
        compiler_params=pltpu.CompilerParams(
            dimension_semantics=("parallel", "arbitrary"),
            vmem_limit_bytes=48 * 1024 * 1024,   # < v7x 64MiB physical, > defaults
        ),
    )(graph_bf16, emb_bf16, acc_f32)


# ---------------------------------------------------------------------------
# LightGCN computer() + forward()
# ---------------------------------------------------------------------------
def lightgcn_computer(user_emb, item_emb, graph, n_layers, *, tm=256, tk=512):
    """Equivalent of LightGCN.computer(): propagation + mean over layers."""
    n_users = user_emb.shape[0]
    all_emb = jnp.concatenate([user_emb, item_emb], axis=0).astype(jnp.float32)
    n, d = all_emb.shape

    # Clamp tiles to the (128-aligned) problem size and zero-pad so arbitrary
    # N works; padded rows/cols are zero and do not affect real outputs.
    tm_eff = min(tm, _round_up(n, 128))
    tk_eff = min(tk, _round_up(n, 128))
    n_pad = _round_up(n, math.lcm(tm_eff, tk_eff))

    graph_p = jnp.zeros((n_pad, n_pad), jnp.bfloat16)
    graph_p = graph_p.at[:n, :n].set(graph.astype(jnp.bfloat16))

    acc = jnp.zeros((n_pad, d), jnp.float32).at[:n, :].set(all_emb)
    cur = acc.astype(jnp.bfloat16)

    inv_layers = 1.0 / float(n_layers + 1)
    for layer in range(n_layers):
        scale = inv_layers if layer == n_layers - 1 else 1.0
        cur, acc = graph_propagate(graph_p, cur, acc,
                                   tm=tm_eff, tk=tk_eff, out_scale=scale)

    light_out = acc[:n]
    return light_out[:n_users], light_out[n_users:]


@functools.partial(jax.jit, static_argnames=("n_layers", "tm", "tk"))
def lightgcn_forward(users, items, user_emb, item_emb, graph, n_layers,
                     tm=256, tk=512):
    """Equivalent of LightGCN.forward(users, items) -> gamma."""
    all_users, all_items = lightgcn_computer(
        user_emb, item_emb, graph, n_layers, tm=tm, tk=tk)
    users_emb = all_users[users]          # gather (glue)
    items_emb = all_items[items]          # gather (glue)
    # Tiny-batch score: plain JAX so XLA fuses gather*mul+sum (per review, a
    # rank-1 Pallas output here would be masked partial stores + launch cost).
    return jnp.sum(users_emb * items_emb, axis=1)


# ---------------------------------------------------------------------------
# Pure-JAX f32 reference for correctness check
# ---------------------------------------------------------------------------
def lightgcn_forward_ref(users, items, user_emb, item_emb, graph, n_layers):
    all_emb = jnp.concatenate([user_emb, item_emb], axis=0)
    embs = [all_emb]
    cur = all_emb
    for _ in range(n_layers):
        cur = graph @ cur
        embs.append(cur)
    light_out = jnp.mean(jnp.stack(embs, axis=1), axis=1)
    n_users = user_emb.shape[0]
    all_users, all_items = light_out[:n_users], light_out[n_users:]
    return jnp.sum(all_users[users] * all_items[items], axis=1)


if __name__ == "__main__":
    # Synthetic config (mirrors LightGCN.__init_weight shapes).
    # N=192 is deliberately NOT a tile multiple (exercises padding) and with
    # tm=tk=128 the kernel runs a 2x2 grid (exercises K-accumulation and the
    # parallel row axis / megacore sharding).
    n_users = 72
    n_items = 120
    N = n_users + n_items
    latent_dim = 32                # config['latent_dim_rec']
    n_layers = 3                   # config['lightGCN_n_layers']
    batch = 8

    key = jax.random.PRNGKey(0)
    k_u, k_i, k_r, k_bu, k_bi = jax.random.split(key, 5)

    # nn.init.normal_(weight, std=0.1) for both embedding tables
    user_emb = 0.1 * jax.random.normal(k_u, (n_users, latent_dim), jnp.float32)
    item_emb = 0.1 * jax.random.normal(k_i, (n_items, latent_dim), jnp.float32)

    # Deterministic synthetic bipartite interaction graph -> symmetric
    # normalized adjacency D^{-1/2} A D^{-1/2} (dense stand-in for
    # getSparseGraph()).
    R = (jax.random.uniform(k_r, (n_users, n_items)) < 0.10).astype(jnp.float32)
    A = jnp.zeros((N, N), jnp.float32)
    A = A.at[:n_users, n_users:].set(R)
    A = A.at[n_users:, :n_users].set(R.T)
    deg = A.sum(axis=1)
    d_inv_sqrt = jnp.where(deg > 0, 1.0 / jnp.sqrt(deg), 0.0)
    graph = d_inv_sqrt[:, None] * A * d_inv_sqrt[None, :]

    # forward(users, items) inputs
    users = jax.random.randint(k_bu, (batch,), 0, n_users, jnp.int32)
    items = jax.random.randint(k_bi, (batch,), 0, n_items, jnp.int32)

    gamma = lightgcn_forward(users, items, user_emb, item_emb, graph,
                             n_layers=n_layers, tm=128, tk=128)
    gamma = jax.block_until_ready(gamma)

    gamma_ref = lightgcn_forward_ref(users, items, user_emb, item_emb, graph,
                                     n_layers)
    assert gamma.shape == (batch,)
    # Tolerance loosened vs f32-only version because the graph / streamed
    # embeddings go through the MXU in bf16 (f32 accumulation).
    assert jnp.allclose(gamma, gamma_ref, atol=5e-3, rtol=5e-2), (gamma, gamma_ref)

    print("KERNEL_OK")
</pallas_src>

<mosaic_0001>
module attributes {stable_mosaic.version = 11 : i64} {
  func.func @_propagate_kernel(%arg0: i32, %arg1: i32, %arg2: memref<128x128xbf16, #tpu.memory_space<vmem>>, %arg3: memref<128x32xbf16, #tpu.memory_space<vmem>>, %arg4: memref<128x32xf32, #tpu.memory_space<vmem>>, %arg5: memref<128x32xbf16, #tpu.memory_space<vmem>>, %arg6: memref<128x32xf32, #tpu.memory_space<vmem>>, %arg7: memref<128x32xf32, #tpu.memory_space<vmem>>) attributes {dimension_semantics = [#tpu.dimension_semantics<parallel>, #tpu.dimension_semantics<arbitrary>], iteration_bounds = array<i64: 2, 2>, scalar_prefetch = 0 : i64, scratch_operands = 1 : i64, tpu.core_type = #tpu.core_type<tc>, window_params = [{transform_indices = @transform_0, window_bounds = array<i64: 128, 128>}, {transform_indices = @transform_1, window_bounds = array<i64: 128, 32>}, {transform_indices = @transform_2, window_bounds = array<i64: 128, 32>}, {transform_indices = @transform_3, window_bounds = array<i64: 128, 32>}, {transform_indices = @transform_4, window_bounds = array<i64: 128, 32>}]} {
    %c0_i32 = arith.constant 0 : i32
    %0 = arith.cmpi eq, %arg1, %c0_i32 : i32
    %1 = arith.extui %0 : i1 to i32
    %c0_i32_0 = arith.constant 0 : i32
    %2 = arith.cmpi ne, %1, %c0_i32_0 : i32
    scf.if %2 {
      %cst_9 = arith.constant 0.000000e+00 : f32
      %12 = vector.broadcast %cst_9 : f32 to vector<128x32xf32>
      %c0_10 = arith.constant 0 : index
      %c0_11 = arith.constant 0 : index
      %13 = vector.load %arg7[%c0_10, %c0_11] : memref<128x32xf32, #tpu.memory_space<vmem>>, vector<128x32xf32>
      tpu.vector_store %arg7[%c0_10, %c0_11], %12 {strides = array<i32>} : memref<128x32xf32, #tpu.memory_space<vmem>>, vector<128x32xf32>,
    } else {
    }
    %c0 = arith.constant 0 : index
    %c0_1 = arith.constant 0 : index
    %3 = vector.load %arg7[%c0, %c0_1] : memref<128x32xf32, #tpu.memory_space<vmem>>, vector<128x32xf32>
    %c0_2 = arith.constant 0 : index
    %c0_3 = arith.constant 0 : index
    %4 = vector.load %arg2[%c0_2, %c0_3] : memref<128x128xbf16, #tpu.memory_space<vmem>>, vector<128x128xbf16>
    %c0_4 = arith.constant 0 : index
    %c0_5 = arith.constant 0 : index
    %5 = vector.load %arg3[%c0_4, %c0_5] : memref<128x32xbf16, #tpu.memory_space<vmem>>, vector<128x32xbf16>
    %cst = arith.constant dense<0.000000e+00> : vector<128x32xf32>
    %6 = tpu.matmul %4, %5, %cst {dimension_numbers = #tpu.dot_dimension_numbers<[1], [0], [0], [1], [0, 0, 1, 1], [], []>} : vector<128x128xbf16>, vector<128x32xbf16>, vector<128x32xf32> -> vector<128x32xf32>
    %7 = arith.addf %3, %6 : vector<128x32xf32>
    %c0_6 = arith.constant 0 : index
    %c0_7 = arith.constant 0 : index
    %8 = vector.load %arg7[%c0_6, %c0_7] : memref<128x32xf32, #tpu.memory_space<vmem>>, vector<128x32xf32>
    tpu.vector_store %arg7[%c0_6, %c0_7], %7 {strides = array<i32>} : memref<128x32xf32, #tpu.memory_space<vmem>>, vector<128x32xf32>,
    %c1_i32 = arith.constant 1 : i32
    %9 = arith.cmpi eq, %arg1, %c1_i32 : i32
    %10 = arith.extui %9 : i1 to i32
    %c0_i32_8 = arith.constant 0 : i32
    %11 = arith.cmpi ne, %10, %c0_i32_8 : i32
    scf.if %11 {
      %c0_9 = arith.constant 0 : index
      %c0_10 = arith.constant 0 : index
      %12 = vector.load %arg7[%c0_9, %c0_10] : memref<128x32xf32, #tpu.memory_space<vmem>>, vector<128x32xf32>
      %13 = arith.truncf %12 : vector<128x32xf32> to vector<128x32xbf16>
      %c0_11 = arith.constant 0 : index
      %c0_12 = arith.constant 0 : index
      %14 = vector.load %arg5[%c0_11, %c0_12] : memref<128x32xbf16, #tpu.memory_space<vmem>>, vector<128x32xbf16>
      tpu.vector_store %arg5[%c0_11, %c0_12], %13 {strides = array<i32>} : memref<128x32xbf16, #tpu.memory_space<vmem>>, vector<128x32xbf16>,
      %c0_13 = arith.constant 0 : index
      %c0_14 = arith.constant 0 : index
      %15 = vector.load %arg4[%c0_13, %c0_14] : memref<128x32xf32, #tpu.memory_space<vmem>>, vector<128x32xf32>
      %16 = arith.addf %15, %12 : vector<128x32xf32>
      %cst_15 = arith.constant 1.000000e+00 : f32
      %17 = vector.broadcast %cst_15 : f32 to vector<128x32xf32>
      %18 = arith.mulf %16, %17 : vector<128x32xf32>
      %c0_16 = arith.constant 0 : index
      %c0_17 = arith.constant 0 : index
      %19 = vector.load %arg6[%c0_16, %c0_17] : memref<128x32xf32, #tpu.memory_space<vmem>>, vector<128x32xf32>
      tpu.vector_store %arg6[%c0_16, %c0_17], %18 {strides = array<i32>} : memref<128x32xf32, #tpu.memory_space<vmem>>, vector<128x32xf32>,
    } else {
    }
    return
  }
  func.func @transform_0(%arg0: i32, %arg1: i32) -> (i32, i32) {
    %c0_i32 = arith.constant 0 : i32
    return %arg0, %arg1 : i32, i32
  }
  func.func @transform_1(%arg0: i32, %arg1: i32) -> (i32, i32) {
    %c0_i32 = arith.constant 0 : i32
    %c0_i32_0 = arith.constant 0 : i32
    return %arg1, %c0_i32 : i32, i32
  }
  func.func @transform_2(%arg0: i32, %arg1: i32) -> (i32, i32) {
    %c0_i32 = arith.constant 0 : i32
    %c0_i32_0 = arith.constant 0 : i32
    return %arg0, %c0_i32 : i32, i32
  }
  func.func @transform_3(%arg0: i32, %arg1: i32) -> (i32, i32) {
    %c0_i32 = arith.constant 0 : i32
    %c0_i32_0 = arith.constant 0 : i32
    return %arg0, %c0_i32 : i32, i32
  }
  func.func @transform_4(%arg0: i32, %arg1: i32) -> (i32, i32) {
    %c0_i32 = arith.constant 0 : i32
    %c0_i32_0 = arith.constant 0 : i32
    return %arg0, %c0_i32 : i32, i32
  }
}

module attributes {stable_mosaic.version = 11 : i64} {
  func.func @_propagate_kernel(%arg0: i32, %arg1: i32, %arg2: memref<128x128xbf16, #tpu.memory_space<vmem>>, %arg3: memref<128x32xbf16, #tpu.memory_space<vmem>>, %arg4: memref<128x32xf32, #tpu.memory_space<vmem>>, %arg5: memref<128x32xbf16, #tpu.memory_space<vmem>>, %arg6: memref<128x32xf32, #tpu.memory_space<vmem>>, %arg7: memref<128x32xf32, #tpu.memory_space<vmem>>) attributes {dimension_semantics = [#tpu.dimension_semantics<parallel>, #tpu.dimension_semantics<arbitrary>], iteration_bounds = array<i64: 2, 2>, scalar_prefetch = 0 : i64, scratch_operands = 1 : i64, tpu.core_type = #tpu.core_type<tc>, window_params = [{transform_indices = @transform_0, window_bounds = array<i64: 128, 128>}, {transform_indices = @transform_1, window_bounds = array<i64: 128, 32>}, {transform_indices = @transform_2, window_bounds = array<i64: 128, 32>}, {transform_indices = @transform_3, window_bounds = array<i64: 128, 32>}, {transform_indices = @transform_4, window_bounds = array<i64: 128, 32>}]} {
    %c0_i32 = arith.constant 0 : i32
    %0 = arith.cmpi eq, %arg1, %c0_i32 : i32
    %1 = arith.extui %0 : i1 to i32
    %c0_i32_0 = arith.constant 0 : i32
    %2 = arith.cmpi ne, %1, %c0_i32_0 : i32
    scf.if %2 {
      %cst_9 = arith.constant 0.000000e+00 : f32
      %12 = vector.broadcast %cst_9 : f32 to vector<128x32xf32>
      %c0_10 = arith.constant 0 : index
      %c0_11 = arith.constant 0 : index
      %13 = vector.load %arg7[%c0_10, %c0_11] : memref<128x32xf32, #tpu.memory_space<vmem>>, vector<128x32xf32>
      tpu.vector_store %arg7[%c0_10, %c0_11], %12 {strides = array<i32>} : memref<128x32xf32, #tpu.memory_space<vmem>>, vector<128x32xf32>,
    } else {
    }
    %c0 = arith.constant 0 : index
    %c0_1 = arith.constant 0 : index
    %3 = vector.load %arg7[%c0, %c0_1] : memref<128x32xf32, #tpu.memory_space<vmem>>, vector<128x32xf32>
    %c0_2 = arith.constant 0 : index
    %c0_3 = arith.constant 0 : index
    %4 = vector.load %arg2[%c0_2, %c0_3] : memref<128x128xbf16, #tpu.memory_space<vmem>>, vector<128x128xbf16>
    %c0_4 = arith.constant 0 : index
    %c0_5 = arith.constant 0 : index
    %5 = vector.load %arg3[%c0_4, %c0_5] : memref<128x32xbf16, #tpu.memory_space<vmem>>, vector<128x32xbf16>
    %cst = arith.constant dense<0.000000e+00> : vector<128x32xf32>
    %6 = tpu.matmul %4, %5, %cst {dimension_numbers = #tpu.dot_dimension_numbers<[1], [0], [0], [1], [0, 0, 1, 1], [], []>} : vector<128x128xbf16>, vector<128x32xbf16>, vector<128x32xf32> -> vector<128x32xf32>
    %7 = arith.addf %3, %6 : vector<128x32xf32>
    %c0_6 = arith.constant 0 : index
    %c0_7 = arith.constant 0 : index
    %8 = vector.load %arg7[%c0_6, %c0_7] : memref<128x32xf32, #tpu.memory_space<vmem>>, vector<128x32xf32>
    tpu.vector_store %arg7[%c0_6, %c0_7], %7 {strides = array<i32>} : memref<128x32xf32, #tpu.memory_space<vmem>>, vector<128x32xf32>,
    %c1_i32 = arith.constant 1 : i32
    %9 = arith.cmpi eq, %arg1, %c1_i32 : i32
    %10 = arith.extui %9 : i1 to i32
    %c0_i32_8 = arith.constant 0 : i32
    %11 = arith.cmpi ne, %10, %c0_i32_8 : i32
    scf.if %11 {
      %c0_9 = arith.constant 0 : index
      %c0_10 = arith.constant 0 : index
      %12 = vector.load %arg7[%c0_9, %c0_10] : memref<128x32xf32, #tpu.memory_space<vmem>>, vector<128x32xf32>
      %13 = arith.truncf %12 : vector<128x32xf32> to vector<128x32xbf16>
      %c0_11 = arith.constant 0 : index
      %c0_12 = arith.constant 0 : index
      %14 = vector.load %arg5[%c0_11, %c0_12] : memref<128x32xbf16, #tpu.memory_space<vmem>>, vector<128x32xbf16>
      tpu.vector_store %arg5[%c0_11, %c0_12], %13 {strides = array<i32>} : memref<128x32xbf16, #tpu.memory_space<vmem>>, vector<128x32xbf16>,
      %c0_13 = arith.constant 0 : index
      %c0_14 = arith.constant 0 : index
      %15 = vector.load %arg4[%c0_13, %c0_14] : memref<128x32xf32, #tpu.memory_space<vmem>>, vector<128x32xf32>
      %16 = arith.addf %15, %12 : vector<128x32xf32>
      %cst_15 = arith.constant 2.500000e-01 : f32
      %17 = vector.broadcast %cst_15 : f32 to vector<128x32xf32>
      %18 = arith.mulf %16, %17 : vector<128x32xf32>
      %c0_16 = arith.constant 0 : index
      %c0_17 = arith.constant 0 : index
      %19 = vector.load %arg6[%c0_16, %c0_17] : memref<128x32xf32, #tpu.memory_space<vmem>>, vector<128x32xf32>
      tpu.vector_store %arg6[%c0_16, %c0_17], %18 {strides = array<i32>} : memref<128x32xf32, #tpu.memory_space<vmem>>, vector<128x32xf32>,
    } else {
    }
    return
  }
  func.func @transform_0(%arg0: i32, %arg1: i32) -> (i32, i32) {
    %c0_i32 = arith.constant 0 : i32
    return %arg0, %arg1 : i32, i32
  }
  func.func @transform_1(%arg0: i32, %arg1: i32) -> (i32, i32) {
    %c0_i32 = arith.constant 0 : i32
    %c0_i32_0 = arith.constant 0 : i32
    return %arg1, %c0_i32 : i32, i32
  }
  func.func @transform_2(%arg0: i32, %arg1: i32) -> (i32, i32) {
    %c0_i32 = arith.constant 0 : i32
    %c0_i32_0 = arith.constant 0 : i32
    return %arg0, %c0_i32 : i32, i32
  }
  func.func @transform_3(%arg0: i32, %arg1: i32) -> (i32, i32) {
    %c0_i32 = arith.constant 0 : i32
    %c0_i32_0 = arith.constant 0 : i32
    return %arg0, %c0_i32 : i32, i32
  }
  func.func @transform_4(%arg0: i32, %arg1: i32) -> (i32, i32) {
    %c0_i32 = arith.constant 0 : i32
    %c0_i32_0 = arith.constant 0 : i32
    return %arg0, %c0_i32 : i32, i32
  }
}

</mosaic_0001>

<llo_original>
// kernel: lightgcn_forward.5
$region0: #{lightgcn_forward.5}
  #allocation0 [shape = 'u32[]', space=smem, size = 0x4, offset = 0x4, fixed_abs, tag = 'smem constant byte address 0x4 - core index']
  #allocation1 [shape = 'u32[144,128]{1,0:T(1,128)}', space=vmem, size = 0x12000, scoped, tag = 'internal scratch']
  #allocation2 [shape = 'f32[128,32]{1,0:T(8,128)}', space=vmem, size = 0x10000, scoped, tag = 'scratch operand']
  %s0 = inlined_call_operand.vmem [shape: bf16[256,256], index: 0, kind: input, shape index: {}]
  %s1 = inlined_call_operand.vmem [shape: bf16[256,32], index: 1, kind: input, shape index: {}]
  %s2 = inlined_call_operand.vmem [shape: f32[256,32], index: 2, kind: input, shape index: {}]
  %s3 = inlined_call_operand.hbm [shape: bf16[256,32], index: 3, kind: output, shape index: {0}]
  %s4 = inlined_call_operand.vmem [shape: f32[256,32], index: 4, kind: output, shape index: {1}]
  %5 = xla_tuple %s3, %s4
  %s6 = sld [smem:[#allocation0]]
  $region102: #{lightgcn_forward.5} parent=0
    _
  %s8 = ssub.s32 1, %s6
  %s9 = scalar_select 0, %s8, %s6
  $region1: #{lightgcn_forward.5} parent=0
    #allocation3 [shape = 'u8[65536]{0}', space=vmem, size = 0x10000, scoped, tag = 'input window, operand 0']
    #allocation4 [shape = 'u8[65536]{0}', space=vmem, size = 0x10000, scoped, tag = 'output window, operand 0']
    #allocation5 [shape = 's32[2]{0}', space=sflag, size = 0x8, scoped, tag = 'scoped memory for lightgcn_forward.5']
    %10 = vsyncpa [#allocation5], 0
    %s11 = scalar_lea.sflag [#allocation5], 1
    %12 = vsyncpa %s11, 0
    loop: start=0, step=1, limit=6
    $region2: #{lightgcn_forward.5} parent=1 // loop_pre_header
      _
    $region3: #{lightgcn_forward.5} parent=1 // loop_header
      %s14 = sphi 0, %s18
      %p15 = scmp.ge.s32.totalorder %s14, 6
      %s21 = sphi 0, %s33
      %s22 = sphi 0, %s29
      %s23 = sphi 0, %s21
      %s24 = sphi 0, %s22
      %s25 = sphi 0, %s23
      %s26 = sphi 0, %s24
      %s38 = sphi 0, %s40
      %s41 = sphi 0, %s38
      %s42 = sphi 0, %s41
      %s58 = sphi 0, %s42
      %s64 = sphi 0, %s66
      %s67 = sphi 0, %s64
      %s68 = sphi 0, %s67
      %s84 = sphi 0, %s68
      %s90 = sphi 0, %s92
      %s93 = sphi 0, %s90
      %s94 = sphi 0, %s93
      %s110 = sphi 0, %s94
      %s116 = sphi 0, %s118
      %s119 = sphi 0, %s116
      %s120 = sphi 0, %s119
      %s136 = sphi 0, %s120
      %s142 = sphi 0, %s144
      %s145 = sphi 0, %s142
      %s146 = sphi 0, %s145
      %s162 = sphi 0, %s146
    $region4: #{lightgcn_forward.5} parent=1 // loop_header_branch
      %17 = sbr.rel (%p15) target = $region8
    $region5: #{lightgcn_forward.5} parent=1 // loop_body
      %s19 = ssub.s32 %s14, 1
      %s20 = ssub.s32 %s14, 2
      %s27 = sadd.s32 1, %s22
      %p28 = scmp.ge.s32.totalorder %s27, 2
      %s29 = scalar_select %p28, 0, %s27
      %s30 = sadd.s32 1, %s21
      %s31 = scalar_select %p28, %s30, %s21
      %p32 = scmp.ge.s32.totalorder %s31, 2
      %s33 = scalar_select %p32, 0, %s31
      %s34 = ssub.s32 %s21, %s33
      %s35 = ssub.s32 %s22, %s29
      %s36 = sor.u32 %s34, %s35
      %p37 = scmp.eq.s32.totalorder %s36, 0
      %s39 = sadd.s32 %s38, 1
      %s40 = scalar_select %p37, %s38, %s39
      %p43 = pneg %p37
      %p44 = scmp.eq.s32.totalorder %s14, 3
      %p45 = por %p43, %p44
      %p46 = scmp.ne.s32.totalorder %s38, %s41
      %p47 = scmp.eq.s32.totalorder %s14, 0
      %p48 = por %p46, %p47
      %p49 = scmp.ne.s32.totalorder %s38, %s41
      %p50 = scmp.eq.s32.totalorder %s19, 3
      %p51 = por %p49, %p50
      %p52 = scmp.ne.s32.totalorder %s41, %s42
      %p53 = scmp.eq.s32.totalorder %s19, 0
      %p54 = por %p52, %p53
      %p55 = scmp.ne.s32.totalorder %s41, %s42
      %p56 = scmp.eq.s32.totalorder %s20, 3
      %p57 = por %p55, %p56
      %p59 = scmp.ne.s32.totalorder %s42, %s58
      %p60 = scmp.eq.s32.totalorder %s20, 0
      %p61 = por %p59, %p60
      %s62 = ssub.s32 %s22, %s29
      %p63 = scmp.eq.s32.totalorder %s62, 0
      %s65 = sadd.s32 %s64, 1
      %s66 = scalar_select %p63, %s64, %s65
      %p69 = pneg %p63
      %p70 = scmp.eq.s32.totalorder %s14, 3
      %p71 = por %p69, %p70
      %p72 = scmp.ne.s32.totalorder %s64, %s67
      %p73 = scmp.eq.s32.totalorder %s14, 0
      %p74 = por %p72, %p73
      %p75 = scmp.ne.s32.totalorder %s64, %s67
      %p76 = scmp.eq.s32.totalorder %s19, 3
      %p77 = por %p75, %p76
      %p78 = scmp.ne.s32.totalorder %s67, %s68
      %p79 = scmp.eq.s32.totalorder %s19, 0
      %p80 = por %p78, %p79
      %p81 = scmp.ne.s32.totalorder %s67, %s68
      %p82 = scmp.eq.s32.totalorder %s20, 3
      %p83 = por %p81, %p82
      %p85 = scmp.ne.s32.totalorder %s68, %s84
      %p86 = scmp.eq.s32.totalorder %s20, 0
      %p87 = por %p85, %p86
      %s88 = ssub.s32 %s21, %s33
      %p89 = scmp.eq.s32.totalorder %s88, 0
      %s91 = sadd.s32 %s90, 1
      %s92 = scalar_select %p89, %s90, %s91
      %p95 = pneg %p89
      %p96 = scmp.eq.s32.totalorder %s14, 3
      %p97 = por %p95, %p96
      %p98 = scmp.ne.s32.totalorder %s90, %s93
      %p99 = scmp.eq.s32.totalorder %s14, 0
      %p100 = por %p98, %p99
      %p101 = scmp.ne.s32.totalorder %s90, %s93
      %p102 = scmp.eq.s32.totalorder %s19, 3
      %p103 = por %p101, %p102
      %p104 = scmp.ne.s32.totalorder %s93, %s94
      %p105 = scmp.eq.s32.totalorder %s19, 0
      %p106 = por %p104, %p105
      %p107 = scmp.ne.s32.totalorder %s93, %s94
      %p108 = scmp.eq.s32.totalorder %s20, 3
      %p109 = por %p107, %p108
      %p111 = scmp.ne.s32.totalorder %s94, %s110
      %p112 = scmp.eq.s32.totalorder %s20, 0
      %p113 = por %p111, %p112
      %s114 = ssub.s32 %s21, %s33
      %p115 = scmp.eq.s32.totalorder %s114, 0
      %s117 = sadd.s32 %s116, 1
      %s118 = scalar_select %p115, %s116, %s117
      %p121 = pneg %p115
      %p122 = scmp.eq.s32.totalorder %s14, 3
      %p123 = por %p121, %p122
      %p124 = scmp.ne.s32.totalorder %s116, %s119
      %p125 = scmp.eq.s32.totalorder %s14, 0
      %p126 = por %p124, %p125
      %p127 = scmp.ne.s32.totalorder %s116, %s119
      %p128 = scmp.eq.s32.totalorder %s19, 3
      %p129 = por %p127, %p128
      %p130 = scmp.ne.s32.totalorder %s119, %s120
      %p131 = scmp.eq.s32.totalorder %s19, 0
      %p132 = por %p130, %p131
      %p133 = scmp.ne.s32.totalorder %s119, %s120
      %p134 = scmp.eq.s32.totalorder %s20, 3
      %p135 = por %p133, %p134
      %p137 = scmp.ne.s32.totalorder %s120, %s136
      %p138 = scmp.eq.s32.totalorder %s20, 0
      %p139 = por %p137, %p138
      %s140 = ssub.s32 %s21, %s33
      %p141 = scmp.eq.s32.totalorder %s140, 0
      %s143 = sadd.s32 %s142, 1
      %s144 = scalar_select %p141, %s142, %s143
      %p147 = pneg %p141
      %p148 = scmp.eq.s32.totalorder %s14, 3
      %p149 = por %p147, %p148
      %p150 = scmp.ne.s32.totalorder %s142, %s145
      %p151 = scmp.eq.s32.totalorder %s14, 0
      %p152 = por %p150, %p151
      %p153 = scmp.ne.s32.totalorder %s142, %s145
      %p154 = scmp.eq.s32.totalorder %s19, 3
      %p155 = por %p153, %p154
      %p156 = scmp.ne.s32.totalorder %s145, %s146
      %p157 = scmp.eq.s32.totalorder %s19, 0
      %p158 = por %p156, %p157
      %p159 = scmp.ne.s32.totalorder %s145, %s146
      %p160 = scmp.eq.s32.totalorder %s20, 3
      %p161 = por %p159, %p160
      %p163 = scmp.ne.s32.totalorder %s146, %s162
      %p164 = scmp.eq.s32.totalorder %s20, 0
      %p165 = por %p163, %p164
      %p166 = scmp.le.s32.totalorder 1, %s14
      %p167 = scmp.lt.s32.totalorder %s14, 5
      %p168 = pnand %p166, %p167
      %p169 = pneg %p168
      // Predicated region
      $region9: #{lightgcn_forward.5} parent=5 // pred_check
        _
      $region10: #{lightgcn_forward.5} parent=5 // pred_check_branch
        %171 = sbr.rel (%p168) target = $region12
      $region11: #{lightgcn_forward.5} parent=5 // pred_region
        %s172 = ssub.s32 %s14, 1
      $region12: #{lightgcn_forward.5} parent=5 // pred_fallthru
        _
      %p173 = scmp.lt.s32.totalorder %s14, 4
      // Predicated region
      $region13: #{lightgcn_forward.5} parent=5 // pred_check
        %p174 = pneg %p173
      $region14: #{lightgcn_forward.5} parent=5 // pred_check_branch
        %176 = sbr.rel (%p174) target = $region16
      $region15: #{lightgcn_forward.5} parent=5 // pred_region
        // Predicated region
        $region17: #{lightgcn_forward.5} parent=15 // pred_check
          %p177 = pneg %p48
        $region18: #{lightgcn_forward.5} parent=15 // pred_check_branch
          %179 = sbr.rel (%p177) target = $region20
        $region19: #{lightgcn_forward.5} parent=15 // pred_region
          %s180 = sand.u32 %s38, 1
          %s181 = sand.u32 %s38, 1
          %s182 = smul.addr %s181, 64
          %s183 = scalar_lea.vmem [#allocation3], %s182
          %s184 = smul.u32 16, %s21
          %s185 = smul.addr %s184, 2
          %s186 = sadd.s32 %s22, %s185
          %s187 = smul.addr %s186, 4
          %s188 = scalar_lea.vmem %s0, %s187
          // Predicated region
          $region21: #{lightgcn_forward.5} parent=19 // pred_check
            _
          $region22: #{lightgcn_forward.5} parent=19 // pred_check_branch
            %190 = sbr.rel (0) target = $region24
          $region23: #{lightgcn_forward.5} parent=19 // pred_region
            // Predicated region
            $region25: #{lightgcn_forward.5} parent=23 // pred_check
              _
            $region26: #{lightgcn_forward.5} parent=23 // pred_check_branch
              %192 = sbr.rel target = $region28
            $region27: #{lightgcn_forward.5} parent=23 // pred_region
              // Predicated region
              $region40: #{lightgcn_forward.5} parent=27 // pred_check
                _
              $region41: #{lightgcn_forward.5} parent=27 // pred_check_branch
                %238 = sbr.rel (0) target = $region43
              $region42: #{lightgcn_forward.5} parent=27 // pred_region
                loop: start=0, step=1, limit=1
                $region44: #{lightgcn_forward.5} parent=42 // loop_pre_header
                  _
                $region45: #{lightgcn_forward.5} parent=42 // loop_header
                  %s240 = sphi 0, %s244
                  %p241 = scmp.ge.s32.totalorder %s240, 1
                  %s245 = sphi %s188, %s188
                  %s246 = sphi %s183, %s183
                $region46: #{lightgcn_forward.5} parent=42 // loop_header_branch
                  %243 = sbr.rel (%p241) target = $region50
                $region47: #{lightgcn_forward.5} parent=42 // loop_body
                  _
                $region48: #{lightgcn_forward.5} parent=42 // loop_footer
                  %s244 = sadd.s32 1, %s240
                $region49: #{lightgcn_forward.5} parent=42 // loop_footer_branch
                  %239 = sbr.rel target = $region45
                $region50: #{lightgcn_forward.5} parent=42 // loop_exit
                  _
                %s248 = ssub.s32 16, 1
                loop: start=0, step=1, limit=1
                $region51: #{lightgcn_forward.5} parent=42 // loop_pre_header
                  _
                $region52: #{lightgcn_forward.5} parent=42 // loop_header
                  %s250 = sphi 0, %s254
                  %p251 = scmp.ge.s32.totalorder %s250, 1
                  %s255 = sphi %s188, %s188
                  %s256 = sphi %s183, %s183
                $region53: #{lightgcn_forward.5} parent=42 // loop_header_branch
                  %253 = sbr.rel (%p251) target = $region57
                $region54: #{lightgcn_forward.5} parent=42 // loop_body
                  %v257 = vld [vmem:[%s255] sm:%s248]
                  %258 = vst [vmem:[%s256] sm:%s248] %v257
                  %v259 = vld [vmem:[%s255 + $0x8] sm:%s248]
                  %260 = vst [vmem:[%s256 + $0x4] sm:%s248] %v259
                  %v261 = vld [vmem:[%s255 + $0x10] sm:%s248]
                  %262 = vst [vmem:[%s256 + $0x8] sm:%s248] %v261
                  %v263 = vld [vmem:[%s255 + $0x18] sm:%s248]
                  %264 = vst [vmem:[%s256 + $0xc] sm:%s248] %v263
                  %v265 = vld [vmem:[%s255 + $0x20] sm:%s248]
                  %266 = vst [vmem:[%s256 + $0x10] sm:%s248] %v265
                  %v267 = vld [vmem:[%s255 + $0x28] sm:%s248]
                  %268 = vst [vmem:[%s256 + $0x14] sm:%s248] %v267
                  %v269 = vld [vmem:[%s255 + $0x30] sm:%s248]
                  %270 = vst [vmem:[%s256 + $0x18] sm:%s248] %v269
                  %v271 = vld [vmem:[%s255 + $0x38] sm:%s248]
                  %272 = vst [vmem:[%s256 + $0x1c] sm:%s248] %v271
                  %v273 = vld [vmem:[%s255 + $0x40] sm:%s248]
                  %274 = vst [vmem:[%s256 + $0x20] sm:%s248] %v273
                  %v275 = vld [vmem:[%s255 + $0x48] sm:%s248]
                  %276 = vst [vmem:[%s256 + $0x24] sm:%s248] %v275
                  %v277 = vld [vmem:[%s255 + $0x50] sm:%s248]
                  %278 = vst [vmem:[%s256 + $0x28] sm:%s248] %v277
                  %v279 = vld [vmem:[%s255 + $0x58] sm:%s248]
                  %280 = vst [vmem:[%s256 + $0x2c] sm:%s248] %v279
                  %v281 = vld [vmem:[%s255 + $0x60] sm:%s248]
                  %282 = vst [vmem:[%s256 + $0x30] sm:%s248] %v281
                  %v283 = vld [vmem:[%s255 + $0x68] sm:%s248]
                  %284 = vst [vmem:[%s256 + $0x34] sm:%s248] %v283
                  %v285 = vld [vmem:[%s255 + $0x70] sm:%s248]
                  %286 = vst [vmem:[%s256 + $0x38] sm:%s248] %v285
                  %v287 = vld [vmem:[%s255 + $0x78] sm:%s248]
                  %288 = vst [vmem:[%s256 + $0x3c] sm:%s248] %v287
                $region55: #{lightgcn_forward.5} parent=42 // loop_footer
                  %s254 = sadd.s32 1, %s250
                $region56: #{lightgcn_forward.5} parent=42 // loop_footer_branch
                  %249 = sbr.rel target = $region52
                $region57: #{lightgcn_forward.5} parent=42 // loop_exit
                  _
              $region43: #{lightgcn_forward.5} parent=27 // pred_fallthru
                _
            $region28: #{lightgcn_forward.5} parent=23 // pred_fallthru
              _
            // Predicated region
            $region29: #{lightgcn_forward.5} parent=23 // pred_check
              _
            $region30: #{lightgcn_forward.5} parent=23 // pred_check_branch
              %194 = sbr.rel (0) target = $region32
            $region31: #{lightgcn_forward.5} parent=23 // pred_region
              %s196 = ssub.s32 16, 1
              loop: start=0, step=1, limit=1
              $region33: #{lightgcn_forward.5} parent=31 // loop_pre_header
                _
              $region34: #{lightgcn_forward.5} parent=31 // loop_header
                %s198 = sphi 0, %s202
                %p199 = scmp.ge.s32.totalorder %s198, 1
                %s203 = sphi %s188, %s188
                %s204 = sphi %s183, %s183
              $region35: #{lightgcn_forward.5} parent=31 // loop_header_branch
                %201 = sbr.rel (%p199) target = $region39
              $region36: #{lightgcn_forward.5} parent=31 // loop_body
                %v205 = vld [vmem:[%s203] sm:%s196]
                %206 = vst [vmem:[%s204] sm:%s196] %v205
                %v207 = vld [vmem:[%s203 + $0x8] sm:%s196]
                %208 = vst [vmem:[%s204 + $0x4] sm:%s196] %v207
                %v209 = vld [vmem:[%s203 + $0x10] sm:%s196]
                %210 = vst [vmem:[%s204 + $0x8] sm:%s196] %v209
                %v211 = vld [vmem:[%s203 + $0x18] sm:%s196]
                %212 = vst [vmem:[%s204 + $0xc] sm:%s196] %v211
                %v213 = vld [vmem:[%s203 + $0x20] sm:%s196]
                %214 = vst [vmem:[%s204 + $0x10] sm:%s196] %v213
                %v215 = vld [vmem:[%s203 + $0x28] sm:%s196]
                %216 = vst [vmem:[%s204 + $0x14] sm:%s196] %v215
                %v217 = vld [vmem:[%s203 + $0x30] sm:%s196]
                %218 = vst [vmem:[%s204 + $0x18] sm:%s196] %v217
                %v219 = vld [vmem:[%s203 + $0x38] sm:%s196]
                %220 = vst [vmem:[%s204 + $0x1c] sm:%s196] %v219
                %v221 = vld [vmem:[%s203 + $0x40] sm:%s196]
                %222 = vst [vmem:[%s204 + $0x20] sm:%s196] %v221
                %v223 = vld [vmem:[%s203 + $0x48] sm:%s196]
                %224 = vst [vmem:[%s204 + $0x24] sm:%s196] %v223
                %v225 = vld [vmem:[%s203 + $0x50] sm:%s196]
                %226 = vst [vmem:[%s204 + $0x28] sm:%s196] %v225
                %v227 = vld [vmem:[%s203 + $0x58] sm:%s196]
                %228 = vst [vmem:[%s204 + $0x2c] sm:%s196] %v227
                %v229 = vld [vmem:[%s203 + $0x60] sm:%s196]
                %230 = vst [vmem:[%s204 + $0x30] sm:%s196] %v229
                %v231 = vld [vmem:[%s203 + $0x68] sm:%s196]
                %232 = vst [vmem:[%s204 + $0x34] sm:%s196] %v231
                %v233 = vld [vmem:[%s203 + $0x70] sm:%s196]
                %234 = vst [vmem:[%s204 + $0x38] sm:%s196] %v233
                %v235 = vld [vmem:[%s203 + $0x78] sm:%s196]
                %236 = vst [vmem:[%s204 + $0x3c] sm:%s196] %v235
              $region37: #{lightgcn_forward.5} parent=31 // loop_footer
                %s202 = sadd.s32 1, %s198
              $region38: #{lightgcn_forward.5} parent=31 // loop_footer_branch
                %197 = sbr.rel target = $region34
              $region39: #{lightgcn_forward.5} parent=31 // loop_exit
                _
            $region32: #{lightgcn_forward.5} parent=23 // pred_fallthru
              _
          $region24: #{lightgcn_forward.5} parent=19 // pred_fallthru
            _
          %289 = vnop
        $region20: #{lightgcn_forward.5} parent=15 // pred_fallthru
          _
        // Predicated region
        $region58: #{lightgcn_forward.5} parent=15 // pred_check
          %p290 = pneg %p74
        $region59: #{lightgcn_forward.5} parent=15 // pred_check_branch
          %292 = sbr.rel (%p290) target = $region61
        $region60: #{lightgcn_forward.5} parent=15 // pred_region
          %s293 = smul.u32 16, %s22
          %p294 = scmp.lt.s32.totalorder %s293, 31
          %s295 = scalar_select %p294, %s293, 31
          %s296 = smul.addr %s295, 4
          %s297 = scalar_lea.vmem %s1, %s296
          %s298 = smul.u32 16, %s22
        $region61: #{lightgcn_forward.5} parent=15 // pred_fallthru
          _
        // Predicated region
        $region62: #{lightgcn_forward.5} parent=15 // pred_check
          %p299 = pneg %p100
        $region63: #{lightgcn_forward.5} parent=15 // pred_check_branch
          %301 = sbr.rel (%p299) target = $region65
        $region64: #{lightgcn_forward.5} parent=15 // pred_region
          %s302 = smul.u32 16, %s21
          %p303 = scmp.lt.s32.totalorder %s302, 31
          %s304 = scalar_select %p303, %s302, 31
          %s305 = smul.addr %s304, 8
          %s306 = scalar_lea.vmem %s2, %s305
          %s307 = smul.u32 16, %s21
        $region65: #{lightgcn_forward.5} parent=15 // pred_fallthru
          _
      $region16: #{lightgcn_forward.5} parent=5 // pred_fallthru
        _
      %p308 = scmp.le.s32.totalorder 1, %s14
      %p309 = scmp.lt.s32.totalorder %s14, 5
      %p310 = pnand %p308, %p309
      %p311 = pneg %p310
      // Predicated region
      $region66: #{lightgcn_forward.5} parent=5 // pred_check
        _
      $region67: #{lightgcn_forward.5} parent=5 // pred_check_branch
        %313 = sbr.rel (%p310) target = $region69
      $region68: #{lightgcn_forward.5} parent=5 // pred_region
        %s314 = ssub.s32 %s14, 1
        %s315 = sand.u32 %s41, 1
        %s316 = sand.u32 %s41, 1
        %s317 = smul.addr %s316, 64
        %s318 = scalar_lea.vmem [#allocation3], %s317
        // Predicated region
        $region70: #{lightgcn_forward.5} parent=68 // pred_check
          %p319 = pneg %p54
        $region71: #{lightgcn_forward.5} parent=68 // pred_check_branch
          %321 = sbr.rel (%p319) target = $region73
        $region72: #{lightgcn_forward.5} parent=68 // pred_region
          _
        $region73: #{lightgcn_forward.5} parent=68 // pred_fallthru
          _
        %s322 = sand.u32 %s41, 1
        %s323 = sand.u32 %s41, 1
        %s324 = smul.addr %s323, 64
        %s325 = scalar_lea.vmem [#allocation3], %s324
        %p326 = pneg %p54
        %p327 = pneg %p51
        %s328 = smul.u32 16, %s24
        %p329 = scmp.lt.s32.totalorder %s328, 31
        %s330 = scalar_select %p329, %s328, 31
        %s331 = smul.addr %s330, 4
        %s332 = scalar_lea.vmem %s1, %s331
        %p333 = pneg %p80
        %p334 = pneg %p77
        %s335 = smul.u32 16, %s23
        %p336 = scmp.lt.s32.totalorder %s335, 31
        %s337 = scalar_select %p336, %s335, 31
        %s338 = smul.addr %s337, 8
        %s339 = scalar_lea.vmem %s2, %s338
        %p340 = pneg %p106
        %p341 = pneg %p103
        %p342 = pneg %p132
        %p343 = pneg %p129
        %s344 = sand.u32 %s119, 1
        %s345 = scalar_lea.sflag [#allocation5], %s344
        %s346 = sand.u32 %s119, 1
        %s347 = smul.addr %s346, 64
        %s348 = scalar_lea.vmem [#allocation4], %s347
        %p349 = pneg %p158
        %p350 = pneg %p155
        %s351 = smul.u32 16, %s23
        %p352 = scmp.lt.s32.totalorder %s351, 31
        %s353 = scalar_select %p352, %s351, 31
        %s354 = smul.addr %s353, 8
        %s355 = scalar_lea.vmem %s4, %s354
        %s356 = smul.u32 16, %s23
        %s357 = smul.u32 16, %s24
        %p358 = scmp.lt.s32.totalorder %s357, 31
        %s359 = scalar_select %p358, %s357, 31
        %s360 = smul.addr %s359, 4
        %s361 = scalar_lea.vmem %s1, %s360
        %s362 = smul.u32 16, %s24
        %s363 = smul.u32 16, %s23
        %p364 = scmp.lt.s32.totalorder %s363, 31
        %s365 = scalar_select %p364, %s363, 31
        %s366 = smul.addr %s365, 8
        %s367 = scalar_lea.vmem %s2, %s366
        %s368 = smul.u32 16, %s23
        %s369 = smul.u32 16, %s23
        %s370 = smul.u32 16, %s23
        %p371 = scmp.lt.s32.totalorder %s370, 31
        %s372 = scalar_select %p371, %s370, 31
        %s373 = smul.addr %s372, 8
        %s374 = scalar_lea.vmem %s4, %s373
        %s375 = smul.u32 16, %s23
        %p377 = scmp.eq.s32.totalorder %s24, 0
        // Predicated region
        $region74: #{lightgcn_forward.5} parent=68 // pred_check
          %p378 = pneg %p377
        $region75: #{lightgcn_forward.5} parent=68 // pred_check_branch
          %380 = sbr.rel (%p378) target = $region77
        $region76: #{lightgcn_forward.5} parent=68 // pred_region
          %vm381 = vcmask 261120
          %382 = vst.msk [vmem:[#allocation2] sm:$0xff] %vm381, 0.0
          %383 = vst.msk [vmem:[#allocation2 + $0x8] sm:$0xff] %vm381, 0.0
          %384 = vst.msk [vmem:[#allocation2 + $0x10] sm:$0xff] %vm381, 0.0
          %385 = vst.msk [vmem:[#allocation2 + $0x18] sm:$0xff] %vm381, 0.0
          %386 = vst.msk [vmem:[#allocation2 + $0x20] sm:$0xff] %vm381, 0.0
          %387 = vst.msk [vmem:[#allocation2 + $0x28] sm:$0xff] %vm381, 0.0
          %388 = vst.msk [vmem:[#allocation2 + $0x30] sm:$0xff] %vm381, 0.0
          %389 = vst.msk [vmem:[#allocation2 + $0x38] sm:$0xff] %vm381, 0.0
          %390 = vst.msk [vmem:[#allocation2 + $0x40] sm:$0xff] %vm381, 0.0
          %391 = vst.msk [vmem:[#allocation2 + $0x48] sm:$0xff] %vm381, 0.0
          %392 = vst.msk [vmem:[#allocation2 + $0x50] sm:$0xff] %vm381, 0.0
          %393 = vst.msk [vmem:[#allocation2 + $0x58] sm:$0xff] %vm381, 0.0
          %394 = vst.msk [vmem:[#allocation2 + $0x60] sm:$0xff] %vm381, 0.0
          %395 = vst.msk [vmem:[#allocation2 + $0x68] sm:$0xff] %vm381, 0.0
          %396 = vst.msk [vmem:[#allocation2 + $0x70] sm:$0xff] %vm381, 0.0
          %397 = vst.msk [vmem:[#allocation2 + $0x78] sm:$0xff] %vm381, 0.0
        $region77: #{lightgcn_forward.5} parent=68 // pred_fallthru
          _
        %v398 = vld [vmem:[#allocation2] sm:$0xff]
        %v399 = vld [vmem:[#allocation2 + $0x8] sm:$0xff]
        %v400 = vld [vmem:[#allocation2 + $0x10] sm:$0xff]
        %v401 = vld [vmem:[#allocation2 + $0x18] sm:$0xff]
        %v402 = vld [vmem:[#allocation2 + $0x20] sm:$0xff]
        %v403 = vld [vmem:[#allocation2 + $0x28] sm:$0xff]
        %v404 = vld [vmem:[#allocation2 + $0x30] sm:$0xff]
        %v405 = vld [vmem:[#allocation2 + $0x38] sm:$0xff]
        %v406 = vld [vmem:[#allocation2 + $0x40] sm:$0xff]
        %v407 = vld [vmem:[#allocation2 + $0x48] sm:$0xff]
        %v408 = vld [vmem:[#allocation2 + $0x50] sm:$0xff]
        %v409 = vld [vmem:[#allocation2 + $0x58] sm:$0xff]
        %v410 = vld [vmem:[#allocation2 + $0x60] sm:$0xff]
        %v411 = vld [vmem:[#allocation2 + $0x68] sm:$0xff]
        %v412 = vld [vmem:[#allocation2 + $0x70] sm:$0xff]
        %v413 = vld [vmem:[#allocation2 + $0x78] sm:$0xff]
        %v414 = vld [vmem:[%s318] sm:$0xf]
        %v415 = vld [vmem:[%s318 + $0x4] sm:$0xf]
        %v416 = vld [vmem:[%s318 + $0x8] sm:$0xf]
        %v417 = vld [vmem:[%s318 + $0xc] sm:$0xf]
        %v418 = vld [vmem:[%s318 + $0x10] sm:$0xf]
        %v419 = vld [vmem:[%s318 + $0x14] sm:$0xf]
        %v420 = vld [vmem:[%s318 + $0x18] sm:$0xf]
        %v421 = vld [vmem:[%s318 + $0x1c] sm:$0xf]
        %v422 = vld [vmem:[%s318 + $0x20] sm:$0xf]
        %v423 = vld [vmem:[%s318 + $0x24] sm:$0xf]
        %v424 = vld [vmem:[%s318 + $0x28] sm:$0xf]
        %v425 = vld [vmem:[%s318 + $0x2c] sm:$0xf]
        %v426 = vld [vmem:[%s318 + $0x30] sm:$0xf]
        %v427 = vld [vmem:[%s318 + $0x34] sm:$0xf]
        %v428 = vld [vmem:[%s318 + $0x38] sm:$0xf]
        %v429 = vld [vmem:[%s318 + $0x3c] sm:$0xf]
        %v430 = vld [vmem:[%s361] sm:$0xf]
        %v431 = vld [vmem:[%s361 + $0x4] sm:$0xf]
        %v432 = vld [vmem:[%s361 + $0x8] sm:$0xf]
        %v433 = vld [vmem:[%s361 + $0xc] sm:$0xf]
        %v434 = vld [vmem:[%s361 + $0x10] sm:$0xf]
        %v435 = vld [vmem:[%s361 + $0x14] sm:$0xf]
        %v436 = vld [vmem:[%s361 + $0x18] sm:$0xf]
        %v437 = vld [vmem:[%s361 + $0x1c] sm:$0xf]
        %v438 = vld [vmem:[%s361 + $0x20] sm:$0xf]
        %v439 = vld [vmem:[%s361 + $0x24] sm:$0xf]
        %v440 = vld [vmem:[%s361 + $0x28] sm:$0xf]
        %v441 = vld [vmem:[%s361 + $0x2c] sm:$0xf]
        %v442 = vld [vmem:[%s361 + $0x30] sm:$0xf]
        %v443 = vld [vmem:[%s361 + $0x34] sm:$0xf]
        %v444 = vld [vmem:[%s361 + $0x38] sm:$0xf]
        %v445 = vld [vmem:[%s361 + $0x3c] sm:$0xf]
        %v462 = vunpack.c.l.b16 %v414
        %v463 = vunpack.c.l.b16 %v415
        %v464 = vunpack.c.l.b16 %v416
        %v465 = vunpack.c.l.b16 %v417
        %v466 = vunpack.c.l.b16 %v418
        %v467 = vunpack.c.l.b16 %v419
        %v468 = vunpack.c.l.b16 %v420
        %v469 = vunpack.c.l.b16 %v421
        %v470 = vunpack.c.l.b16 %v422
        %v471 = vunpack.c.l.b16 %v423
        %v472 = vunpack.c.l.b16 %v424
        %v473 = vunpack.c.l.b16 %v425
        %v474 = vunpack.c.l.b16 %v426
        %v475 = vunpack.c.l.b16 %v427
        %v476 = vunpack.c.l.b16 %v428
        %v477 = vunpack.c.l.b16 %v429
        %v478 = vpack.c.b16 %v463, %v462
        %v479 = vpack.c.b16 %v465, %v464
        %v480 = vpack.c.b16 %v467, %v466
        %v481 = vpack.c.b16 %v469, %v468
        %v482 = vpack.c.b16 %v471, %v470
        %v483 = vpack.c.b16 %v473, %v472
        %v484 = vpack.c.b16 %v475, %v474
        %v485 = vpack.c.b16 %v477, %v476
        %v510 = vunpack.c.l.b16 %v430
        %v511 = vunpack.c.l.b16 %v431
        %v512 = vunpack.c.l.b16 %v432
        %v513 = vunpack.c.l.b16 %v433
        %v514 = vunpack.c.l.b16 %v434
        %v515 = vunpack.c.l.b16 %v435
        %v516 = vunpack.c.l.b16 %v436
        %v517 = vunpack.c.l.b16 %v437
        %v518 = vunpack.c.l.b16 %v438
        %v519 = vunpack.c.l.b16 %v439
        %v520 = vunpack.c.l.b16 %v440
        %v521 = vunpack.c.l.b16 %v441
        %v522 = vunpack.c.l.b16 %v442
        %v523 = vunpack.c.l.b16 %v443
        %v524 = vunpack.c.l.b16 %v444
        %v525 = vunpack.c.l.b16 %v445
        %v526 = vpack.c.b16 %v511, %v510
        %v527 = vpack.c.b16 %v513, %v512
        %v528 = vpack.c.b16 %v515, %v514
        %v529 = vpack.c.b16 %v517, %v516
        %v530 = vpack.c.b16 %v519, %v518
        %v531 = vpack.c.b16 %v521, %v520
        %v532 = vpack.c.b16 %v523, %v522
        %v533 = vpack.c.b16 %v525, %v524
        %542 = vmatprep.subr.bf16.mxu0 0
        %543 = vmatpush1.bf16.msra.mxu0 %v533
        %544 = vmatprep.subr.bf16.mxu0 0
        %545 = vmatpush1.bf16.msra.mxu0 %v532
        %546 = vmatprep.subr.bf16.mxu0 0
        %547 = vmatpush1.bf16.msra.mxu0 %v531
        %548 = vmatprep.subr.bf16.mxu0 0
        %549 = vmatpush1.bf16.msra.mxu0 %v530
        %550 = vmatprep.subr.bf16.mxu0 0
        %551 = vmatpush1.bf16.msra.mxu0 %v529
        %552 = vmatprep.subr.bf16.mxu0 0
        %553 = vmatpush1.bf16.msra.mxu0 %v528
        %554 = vmatprep.subr.bf16.mxu0 0
        %555 = vmatpush1.bf16.msra.mxu0 %v527
        %556 = vmatprep.subr.bf16.mxu0 0
        %557 = vmatpush1.bf16.msra.mxu0 %v526
        %558 = vmatprep.subr.bf16.mxu0 0
        %559 = vmatpush2.bf16.msra.mxu0 0
        %560 = vmatprep.subr.bf16.mxu0 0
        %561 = vmatpush2.bf16.msra.mxu0 0
        %562 = vmatprep.subr.bf16.mxu0 0
        %563 = vmatpush2.bf16.msra.mxu0 0
        %564 = vmatprep.subr.bf16.mxu0 0
        %565 = vmatpush2.bf16.msra.mxu0 0
        %566 = vmatprep.subr.bf16.mxu0 0
        %567 = vmatpush2.bf16.msra.mxu0 0
        %568 = vmatprep.subr.bf16.mxu0 0
        %569 = vmatpush2.bf16.msra.mxu0 0
        %570 = vmatprep.subr.bf16.mxu0 0
        %571 = vmatpush2.bf16.msra.mxu0 0
        %572 = vmatprep.subr.bf16.mxu0 0
        %573 = vmatpush2.bf16.msra.mxu0 0
        %574 = vmatprep.mubr.bf16.mxu0 0
        %575 = vmatmul.mubr.bf16.gmra.mxu0 %v478
        %v576 = vpop.f32.mrf.mxu0
        %v577 = vadd.f32 0.0, %v576
        %v578 = vpop.f32.mrf.mxu0
        %v579 = vpop.f32.mrf.mxu0
        %v580 = vadd.f32 0.0, %v579
        %v581 = vpop.f32.mrf.mxu0
        %582 = vmatprep.mubr.bf16.mxu0 0
        %583 = vmatmul.mubr.bf16.gmra.mxu0 %v479
        %v584 = vpop.f32.mrf.mxu0
        %v585 = vadd.f32 0.0, %v584
        %v586 = vpop.f32.mrf.mxu0
        %v587 = vpop.f32.mrf.mxu0
        %v588 = vadd.f32 0.0, %v587
        %v589 = vpop.f32.mrf.mxu0
        %590 = vmatprep.mubr.bf16.mxu0 0
        %591 = vmatmul.mubr.bf16.gmra.mxu0 %v480
        %v592 = vpop.f32.mrf.mxu0
        %v593 = vadd.f32 0.0, %v592
        %v594 = vpop.f32.mrf.mxu0
        %v595 = vpop.f32.mrf.mxu0
        %v596 = vadd.f32 0.0, %v595
        %v597 = vpop.f32.mrf.mxu0
        %598 = vmatprep.mubr.bf16.mxu0 0
        %599 = vmatmul.mubr.bf16.gmra.mxu0 %v481
        %v600 = vpop.f32.mrf.mxu0
        %v601 = vadd.f32 0.0, %v600
        %v602 = vpop.f32.mrf.mxu0
        %v603 = vpop.f32.mrf.mxu0
        %v604 = vadd.f32 0.0, %v603
        %v605 = vpop.f32.mrf.mxu0
        %606 = vmatprep.mubr.bf16.mxu0 0
        %607 = vmatmul.mubr.bf16.gmra.mxu0 %v482
        %v608 = vpop.f32.mrf.mxu0
        %v609 = vadd.f32 0.0, %v608
        %v610 = vpop.f32.mrf.mxu0
        %v611 = vpop.f32.mrf.mxu0
        %v612 = vadd.f32 0.0, %v611
        %v613 = vpop.f32.mrf.mxu0
        %614 = vmatprep.mubr.bf16.mxu0 0
        %615 = vmatmul.mubr.bf16.gmra.mxu0 %v483
        %v616 = vpop.f32.mrf.mxu0
        %v617 = vadd.f32 0.0, %v616
        %v618 = vpop.f32.mrf.mxu0
        %v619 = vpop.f32.mrf.mxu0
        %v620 = vadd.f32 0.0, %v619
        %v621 = vpop.f32.mrf.mxu0
        %622 = vmatprep.mubr.bf16.mxu0 0
        %623 = vmatmul.mubr.bf16.gmra.mxu0 %v484
        %v624 = vpop.f32.mrf.mxu0
        %v625 = vadd.f32 0.0, %v624
        %v626 = vpop.f32.mrf.mxu0
        %v627 = vpop.f32.mrf.mxu0
        %v628 = vadd.f32 0.0, %v627
        %v629 = vpop.f32.mrf.mxu0
        %630 = vmatprep.mubr.bf16.mxu0 0
        %631 = vmatmul.mubr.bf16.gmra.mxu0 %v485
        %v632 = vpop.f32.mrf.mxu0
        %v633 = vadd.f32 0.0, %v632
        %v634 = vpop.f32.mrf.mxu0
        %v635 = vpop.f32.mrf.mxu0
        %v636 = vadd.f32 0.0, %v635
        %v637 = vpop.f32.mrf.mxu0
        %638 = vdwg.mxu0
        %v639 = vadd.f32 %v398, %v577
        %v640 = vadd.f32 %v399, %v580
        %v641 = vadd.f32 %v400, %v585
        %v642 = vadd.f32 %v401, %v588
        %v643 = vadd.f32 %v402, %v593
        %v644 = vadd.f32 %v403, %v596
        %v645 = vadd.f32 %v404, %v601
        %v646 = vadd.f32 %v405, %v604
        %v647 = vadd.f32 %v406, %v609
        %v648 = vadd.f32 %v407, %v612
        %v649 = vadd.f32 %v408, %v617
        %v650 = vadd.f32 %v409, %v620
        %v651 = vadd.f32 %v410, %v625
        %v652 = vadd.f32 %v411, %v628
        %v653 = vadd.f32 %v412, %v633
        %v654 = vadd.f32 %v413, %v636
        %vm655 = vcmask 261120
        %656 = vst.msk [vmem:[#allocation2] sm:$0xff] %vm655, %v639
        %657 = vst.msk [vmem:[#allocation2 + $0x8] sm:$0xff] %vm655, %v640
        %658 = vst.msk [vmem:[#allocation2 + $0x10] sm:$0xff] %vm655, %v641
        %659 = vst.msk [vmem:[#allocation2 + $0x18] sm:$0xff] %vm655, %v642
        %660 = vst.msk [vmem:[#allocation2 + $0x20] sm:$0xff] %vm655, %v643
        %661 = vst.msk [vmem:[#allocation2 + $0x28] sm:$0xff] %vm655, %v644
        %662 = vst.msk [vmem:[#allocation2 + $0x30] sm:$0xff] %vm655, %v645
        %663 = vst.msk [vmem:[#allocation2 + $0x38] sm:$0xff] %vm655, %v646
        %664 = vst.msk [vmem:[#allocation2 + $0x40] sm:$0xff] %vm655, %v647
        %665 = vst.msk [vmem:[#allocation2 + $0x48] sm:$0xff] %vm655, %v648
        %666 = vst.msk [vmem:[#allocation2 + $0x50] sm:$0xff] %vm655, %v649
        %667 = vst.msk [vmem:[#allocation2 + $0x58] sm:$0xff] %vm655, %v650
        %668 = vst.msk [vmem:[#allocation2 + $0x60] sm:$0xff] %vm655, %v651
        %669 = vst.msk [vmem:[#allocation2 + $0x68] sm:$0xff] %vm655, %v652
        %670 = vst.msk [vmem:[#allocation2 + $0x70] sm:$0xff] %vm655, %v653
        %671 = vst.msk [vmem:[#allocation2 + $0x78] sm:$0xff] %vm655, %v654
        %p672 = scmp.eq.s32.totalorder %s24, 1
        // Predicated region
        $region78: #{lightgcn_forward.5} parent=68 // pred_check
          %p673 = pneg %p672
        $region79: #{lightgcn_forward.5} parent=68 // pred_check_branch
          %675 = sbr.rel (%p673) target = $region81
        $region80: #{lightgcn_forward.5} parent=68 // pred_region
          %v676 = vld [vmem:[#allocation2] sm:$0xff]
          %v677 = vld [vmem:[#allocation2 + $0x8] sm:$0xff]
          %v678 = vld [vmem:[#allocation2 + $0x10] sm:$0xff]
          %v679 = vld [vmem:[#allocation2 + $0x18] sm:$0xff]
          %v680 = vld [vmem:[#allocation2 + $0x20] sm:$0xff]
          %v681 = vld [vmem:[#allocation2 + $0x28] sm:$0xff]
          %v682 = vld [vmem:[#allocation2 + $0x30] sm:$0xff]
          %v683 = vld [vmem:[#allocation2 + $0x38] sm:$0xff]
          %v684 = vld [vmem:[#allocation2 + $0x40] sm:$0xff]
          %v685 = vld [vmem:[#allocation2 + $0x48] sm:$0xff]
          %v686 = vld [vmem:[#allocation2 + $0x50] sm:$0xff]
          %v687 = vld [vmem:[#allocation2 + $0x58] sm:$0xff]
          %v688 = vld [vmem:[#allocation2 + $0x60] sm:$0xff]
          %v689 = vld [vmem:[#allocation2 + $0x68] sm:$0xff]
          %v690 = vld [vmem:[#allocation2 + $0x70] sm:$0xff]
          %v691 = vld [vmem:[#allocation2 + $0x78] sm:$0xff]
          %v692 = vpack.c.bf16 %v677, %v676
          %v693 = vpack.c.bf16 %v679, %v678
          %v694 = vpack.c.bf16 %v681, %v680
          %v695 = vpack.c.bf16 %v683, %v682
          %v696 = vpack.c.bf16 %v685, %v684
          %v697 = vpack.c.bf16 %v687, %v686
          %v698 = vpack.c.bf16 %v689, %v688
          %v699 = vpack.c.bf16 %v691, %v690
          %v708 = vunpack.c.l.b16 %v692
          %v709 = vunpack.c.h.b16 %v692
          %v710 = vunpack.c.l.b16 %v693
          %v711 = vunpack.c.h.b16 %v693
          %v712 = vunpack.c.l.b16 %v694
          %v713 = vunpack.c.h.b16 %v694
          %v714 = vunpack.c.l.b16 %v695
          %v715 = vunpack.c.h.b16 %v695
          %v716 = vunpack.c.l.b16 %v696
          %v717 = vunpack.c.h.b16 %v696
          %v718 = vunpack.c.l.b16 %v697
          %v719 = vunpack.c.h.b16 %v697
          %v720 = vunpack.c.l.b16 %v698
          %v721 = vunpack.c.h.b16 %v698
          %v722 = vunpack.c.l.b16 %v699
          %v723 = vunpack.c.h.b16 %v699
          %v724 = vpack.c.b16 %v708, %v708
          %v725 = vpack.c.b16 %v709, %v709
          %v726 = vpack.c.b16 %v710, %v710
          %v727 = vpack.c.b16 %v711, %v711
          %v728 = vpack.c.b16 %v712, %v712
          %v729 = vpack.c.b16 %v713, %v713
          %v730 = vpack.c.b16 %v714, %v714
          %v731 = vpack.c.b16 %v715, %v715
          %v732 = vpack.c.b16 %v716, %v716
          %v733 = vpack.c.b16 %v717, %v717
          %v734 = vpack.c.b16 %v718, %v718
          %v735 = vpack.c.b16 %v719, %v719
          %v736 = vpack.c.b16 %v720, %v720
          %v737 = vpack.c.b16 %v721, %v721
          %v738 = vpack.c.b16 %v722, %v722
          %v739 = vpack.c.b16 %v723, %v723
          %vm756 = vcmask 257024
          %757 = vst.msk [vmem:[%s348] sm:$0xf] %vm756, %v724
          %758 = vst.msk [vmem:[%s348 + $0x4] sm:$0xf] %vm756, %v725
          %759 = vst.msk [vmem:[%s348 + $0x8] sm:$0xf] %vm756, %v726
          %760 = vst.msk [vmem:[%s348 + $0xc] sm:$0xf] %vm756, %v727
          %761 = vst.msk [vmem:[%s348 + $0x10] sm:$0xf] %vm756, %v728
          %762 = vst.msk [vmem:[%s348 + $0x14] sm:$0xf] %vm756, %v729
          %763 = vst.msk [vmem:[%s348 + $0x18] sm:$0xf] %vm756, %v730
          %764 = vst.msk [vmem:[%s348 + $0x1c] sm:$0xf] %vm756, %v731
          %765 = vst.msk [vmem:[%s348 + $0x20] sm:$0xf] %vm756, %v732
          %766 = vst.msk [vmem:[%s348 + $0x24] sm:$0xf] %vm756, %v733
          %767 = vst.msk [vmem:[%s348 + $0x28] sm:$0xf] %vm756, %v734
          %768 = vst.msk [vmem:[%s348 + $0x2c] sm:$0xf] %vm756, %v735
          %769 = vst.msk [vmem:[%s348 + $0x30] sm:$0xf] %vm756, %v736
          %770 = vst.msk [vmem:[%s348 + $0x34] sm:$0xf] %vm756, %v737
          %771 = vst.msk [vmem:[%s348 + $0x38] sm:$0xf] %vm756, %v738
          %772 = vst.msk [vmem:[%s348 + $0x3c] sm:$0xf] %vm756, %v739
          %v773 = vld [vmem:[%s367] sm:$0xff]
          %v774 = vld [vmem:[%s367 + $0x8] sm:$0xff]
          %v775 = vld [vmem:[%s367 + $0x10] sm:$0xff]
          %v776 = vld [vmem:[%s367 + $0x18] sm:$0xff]
          %v777 = vld [vmem:[%s367 + $0x20] sm:$0xff]
          %v778 = vld [vmem:[%s367 + $0x28] sm:$0xff]
          %v779 = vld [vmem:[%s367 + $0x30] sm:$0xff]
          %v780 = vld [vmem:[%s367 + $0x38] sm:$0xff]
          %v781 = vld [vmem:[%s367 + $0x40] sm:$0xff]
          %v782 = vld [vmem:[%s367 + $0x48] sm:$0xff]
          %v783 = vld [vmem:[%s367 + $0x50] sm:$0xff]
          %v784 = vld [vmem:[%s367 + $0x58] sm:$0xff]
          %v785 = vld [vmem:[%s367 + $0x60] sm:$0xff]
          %v786 = vld [vmem:[%s367 + $0x68] sm:$0xff]
          %v787 = vld [vmem:[%s367 + $0x70] sm:$0xff]
          %v788 = vld [vmem:[%s367 + $0x78] sm:$0xff]
          %v789 = vadd.f32 %v773, %v676
          %v790 = vadd.f32 %v774, %v677
          %v791 = vadd.f32 %v775, %v678
          %v792 = vadd.f32 %v776, %v679
          %v793 = vadd.f32 %v777, %v680
          %v794 = vadd.f32 %v778, %v681
          %v795 = vadd.f32 %v779, %v682
          %v796 = vadd.f32 %v780, %v683
          %v797 = vadd.f32 %v781, %v684
          %v798 = vadd.f32 %v782, %v685
          %v799 = vadd.f32 %v783, %v686
          %v800 = vadd.f32 %v784, %v687
          %v801 = vadd.f32 %v785, %v688
          %v802 = vadd.f32 %v786, %v689
          %v803 = vadd.f32 %v787, %v690
          %v804 = vadd.f32 %v788, %v691
          %v805 = vmul.f32 %v789, 0.25
          %v806 = vmul.f32 %v790, 0.25
          %v807 = vmul.f32 %v791, 0.25
          %v808 = vmul.f32 %v792, 0.25
          %v809 = vmul.f32 %v793, 0.25
          %v810 = vmul.f32 %v794, 0.25
          %v811 = vmul.f32 %v795, 0.25
          %v812 = vmul.f32 %v796, 0.25
          %v813 = vmul.f32 %v797, 0.25
          %v814 = vmul.f32 %v798, 0.25
          %v815 = vmul.f32 %v799, 0.25
          %v816 = vmul.f32 %v800, 0.25
          %v817 = vmul.f32 %v801, 0.25
          %v818 = vmul.f32 %v802, 0.25
          %v819 = vmul.f32 %v803, 0.25
          %v820 = vmul.f32 %v804, 0.25
          %821 = vst.msk [vmem:[%s374] sm:$0xff] %vm655, %v805
          %822 = vst.msk [vmem:[%s374 + $0x8] sm:$0xff] %vm655, %v806
          %823 = vst.msk [vmem:[%s374 + $0x10] sm:$0xff] %vm655, %v807
          %824 = vst.msk [vmem:[%s374 + $0x18] sm:$0xff] %vm655, %v808
          %825 = vst.msk [vmem:[%s374 + $0x20] sm:$0xff] %vm655, %v809
          %826 = vst.msk [vmem:[%s374 + $0x28] sm:$0xff] %vm655, %v810
          %827 = vst.msk [vmem:[%s374 + $0x30] sm:$0xff] %vm655, %v811
          %828 = vst.msk [vmem:[%s374 + $0x38] sm:$0xff] %vm655, %v812
          %829 = vst.msk [vmem:[%s374 + $0x40] sm:$0xff] %vm655, %v813
          %830 = vst.msk [vmem:[%s374 + $0x48] sm:$0xff] %vm655, %v814
          %831 = vst.msk [vmem:[%s374 + $0x50] sm:$0xff] %vm655, %v815
          %832 = vst.msk [vmem:[%s374 + $0x58] sm:$0xff] %vm655, %v816
          %833 = vst.msk [vmem:[%s374 + $0x60] sm:$0xff] %vm655, %v817
          %834 = vst.msk [vmem:[%s374 + $0x68] sm:$0xff] %vm655, %v818
          %835 = vst.msk [vmem:[%s374 + $0x70] sm:$0xff] %vm655, %v819
          %836 = vst.msk [vmem:[%s374 + $0x78] sm:$0xff] %vm655, %v820
        $region81: #{lightgcn_forward.5} parent=68 // pred_fallthru
          _
        %s837 = sand.u32 %s119, 1
        %s838 = scalar_lea.sflag [#allocation5], %s837
        %s839 = sand.u32 %s119, 1
        %s840 = smul.addr %s839, 64
        %s841 = scalar_lea.vmem [#allocation4], %s840
        %s842 = smul.u32 16, %s23
        %p843 = scmp.lt.s32.totalorder %s842, 31
        %s844 = scalar_select %p843, %s842, 31
        %s845 = smul.addr %s844, 8
        %s846 = scalar_lea.vmem %s4, %s845
        // Predicated region
        $region82: #{lightgcn_forward.5} parent=68 // pred_check
          %p847 = pneg %p129
        $region83: #{lightgcn_forward.5} parent=68 // pred_check_branch
          %849 = sbr.rel (%p847) target = $region85
        $region84: #{lightgcn_forward.5} parent=68 // pred_region
          %s850 = smul.u32 16, %s23
          %s852 = ssub.s32 1024, 1024
          %853 = vsyncadd %s838, %s852
          %s854 = smul.addr %s850, 64
          %s855 = scalar_lea.hbm %s3, %s854
          %s856 = sshll.u32 %s841, 4
          %s857 = int_to_ptr.vmem [resolvable:$true] %s856
          %862 = dma.vmem_to_hbm [thread:$0]  %s857, 1024, %s855, %s838, 64, 64, 4
        $region85: #{lightgcn_forward.5} parent=68 // pred_fallthru
          _
        // Predicated region
        $region86: #{lightgcn_forward.5} parent=68 // pred_check
          %p863 = pneg %p155
        $region87: #{lightgcn_forward.5} parent=68 // pred_check_branch
          %865 = sbr.rel (%p863) target = $region89
        $region88: #{lightgcn_forward.5} parent=68 // pred_region
          %s866 = smul.u32 16, %s23
        $region89: #{lightgcn_forward.5} parent=68 // pred_fallthru
          _
      $region69: #{lightgcn_forward.5} parent=5 // pred_fallthru
        _
      %p867 = scmp.le.s32.totalorder 2, %s14
      // Predicated region
      $region90: #{lightgcn_forward.5} parent=5 // pred_check
        %p868 = pneg %p867
      $region91: #{lightgcn_forward.5} parent=5 // pred_check_branch
        %870 = sbr.rel (%p868) target = $region93
      $region92: #{lightgcn_forward.5} parent=5 // pred_region
        %s871 = ssub.s32 %s14, 2
        // Predicated region
        $region94: #{lightgcn_forward.5} parent=92 // pred_check
          %p872 = pneg %p135
        $region95: #{lightgcn_forward.5} parent=92 // pred_check_branch
          %874 = sbr.rel (%p872) target = $region97
        $region96: #{lightgcn_forward.5} parent=92 // pred_region
          %s875 = sand.u32 %s120, 1
          %s876 = scalar_lea.sflag [#allocation5], %s875
          %s877 = sand.u32 %s120, 1
          %s878 = smul.addr %s877, 64
          %s879 = scalar_lea.vmem [#allocation4], %s878
          %880 = dma.done %s876, 1024
        $region97: #{lightgcn_forward.5} parent=92 // pred_fallthru
          _
        // Predicated region
        $region98: #{lightgcn_forward.5} parent=92 // pred_check
          %p881 = pneg %p161
        $region99: #{lightgcn_forward.5} parent=92 // pred_check_branch
          %883 = sbr.rel (%p881) target = $region101
        $region100: #{lightgcn_forward.5} parent=92 // pred_region
          %s884 = smul.u32 16, %s25
          %p885 = scmp.lt.s32.totalorder %s884, 31
          %s886 = scalar_select %p885, %s884, 31
          %s887 = smul.addr %s886, 8
          %s888 = scalar_lea.vmem %s4, %s887
        $region101: #{lightgcn_forward.5} parent=92 // pred_fallthru
          _
      $region93: #{lightgcn_forward.5} parent=5 // pred_fallthru
        _
    $region6: #{lightgcn_forward.5} parent=1 // loop_footer
      %s18 = sadd.s32 1, %s14
    $region7: #{lightgcn_forward.5} parent=1 // loop_footer_branch
      %13 = sbr.rel target = $region3
    $region8: #{lightgcn_forward.5} parent=1 // loop_exit
      _
    %889 = vsyncpa [#allocation5], 1
    %s890 = scalar_lea.sflag [#allocation5], 1
    %891 = vsyncpa %s890, 1

// kernel: lightgcn_forward.3
$region0: #{lightgcn_forward.3}
  #allocation0 [shape = 'u32[]', space=smem, size = 0x4, offset = 0x4, fixed_abs, tag = 'smem constant byte address 0x4 - core index']
  #allocation1 [shape = 'u32[144,128]{1,0:T(1,128)}', space=vmem, size = 0x12000, scoped, tag = 'internal scratch']
  #allocation2 [shape = 'f32[128,32]{1,0:T(8,128)}', space=vmem, size = 0x10000, scoped, tag = 'scratch operand']
  %s0 = inlined_call_operand.vmem [shape: bf16[256,256], index: 0, kind: input, shape index: {}]
  %s1 = inlined_call_operand.vmem [shape: bf16[256,32], index: 1, kind: input, shape index: {}]
  %s2 = inlined_call_operand.vmem [shape: f32[256,32], index: 2, kind: input, shape index: {}]
  %s3 = inlined_call_operand.vmem [shape: bf16[256,32], index: 3, kind: output, shape index: {0}]
  %s4 = inlined_call_operand.vmem [shape: f32[256,32], index: 4, kind: output, shape index: {1}]
  %5 = xla_tuple %s3, %s4
  %s6 = sld [smem:[#allocation0]]
  $region102: #{lightgcn_forward.3} parent=0
    _
  %s8 = ssub.s32 1, %s6
  %s9 = scalar_select 0, %s8, %s6
  $region1: #{lightgcn_forward.3} parent=0
    #allocation3 [shape = 'u8[65536]{0}', space=vmem, size = 0x10000, scoped, tag = 'input window, operand 0']
    loop: start=0, step=1, limit=6
    $region2: #{lightgcn_forward.3} parent=1 // loop_pre_header
      _
    $region3: #{lightgcn_forward.3} parent=1 // loop_header
      %s11 = sphi 0, %s15
      %p12 = scmp.ge.s32.totalorder %s11, 6
      %s18 = sphi 0, %s30
      %s19 = sphi 0, %s26
      %s20 = sphi 0, %s18
      %s21 = sphi 0, %s19
      %s22 = sphi 0, %s20
      %s23 = sphi 0, %s21
      %s35 = sphi 0, %s37
      %s38 = sphi 0, %s35
      %s39 = sphi 0, %s38
      %s55 = sphi 0, %s39
      %s61 = sphi 0, %s63
      %s64 = sphi 0, %s61
      %s65 = sphi 0, %s64
      %s81 = sphi 0, %s65
      %s87 = sphi 0, %s89
      %s90 = sphi 0, %s87
      %s91 = sphi 0, %s90
      %s107 = sphi 0, %s91
      %s113 = sphi 0, %s115
      %s116 = sphi 0, %s113
      %s117 = sphi 0, %s116
      %s133 = sphi 0, %s117
      %s139 = sphi 0, %s141
      %s142 = sphi 0, %s139
      %s143 = sphi 0, %s142
      %s159 = sphi 0, %s143
    $region4: #{lightgcn_forward.3} parent=1 // loop_header_branch
      %14 = sbr.rel (%p12) target = $region8
    $region5: #{lightgcn_forward.3} parent=1 // loop_body
      %s16 = ssub.s32 %s11, 1
      %s17 = ssub.s32 %s11, 2
      %s24 = sadd.s32 1, %s19
      %p25 = scmp.ge.s32.totalorder %s24, 2
      %s26 = scalar_select %p25, 0, %s24
      %s27 = sadd.s32 1, %s18
      %s28 = scalar_select %p25, %s27, %s18
      %p29 = scmp.ge.s32.totalorder %s28, 2
      %s30 = scalar_select %p29, 0, %s28
      %s31 = ssub.s32 %s18, %s30
      %s32 = ssub.s32 %s19, %s26
      %s33 = sor.u32 %s31, %s32
      %p34 = scmp.eq.s32.totalorder %s33, 0
      %s36 = sadd.s32 %s35, 1
      %s37 = scalar_select %p34, %s35, %s36
      %p40 = pneg %p34
      %p41 = scmp.eq.s32.totalorder %s11, 3
      %p42 = por %p40, %p41
      %p43 = scmp.ne.s32.totalorder %s35, %s38
      %p44 = scmp.eq.s32.totalorder %s11, 0
      %p45 = por %p43, %p44
      %p46 = scmp.ne.s32.totalorder %s35, %s38
      %p47 = scmp.eq.s32.totalorder %s16, 3
      %p48 = por %p46, %p47
      %p49 = scmp.ne.s32.totalorder %s38, %s39
      %p50 = scmp.eq.s32.totalorder %s16, 0
      %p51 = por %p49, %p50
      %p52 = scmp.ne.s32.totalorder %s38, %s39
      %p53 = scmp.eq.s32.totalorder %s17, 3
      %p54 = por %p52, %p53
      %p56 = scmp.ne.s32.totalorder %s39, %s55
      %p57 = scmp.eq.s32.totalorder %s17, 0
      %p58 = por %p56, %p57
      %s59 = ssub.s32 %s19, %s26
      %p60 = scmp.eq.s32.totalorder %s59, 0
      %s62 = sadd.s32 %s61, 1
      %s63 = scalar_select %p60, %s61, %s62
      %p66 = pneg %p60
      %p67 = scmp.eq.s32.totalorder %s11, 3
      %p68 = por %p66, %p67
      %p69 = scmp.ne.s32.totalorder %s61, %s64
      %p70 = scmp.eq.s32.totalorder %s11, 0
      %p71 = por %p69, %p70
      %p72 = scmp.ne.s32.totalorder %s61, %s64
      %p73 = scmp.eq.s32.totalorder %s16, 3
      %p74 = por %p72, %p73
      %p75 = scmp.ne.s32.totalorder %s64, %s65
      %p76 = scmp.eq.s32.totalorder %s16, 0
      %p77 = por %p75, %p76
      %p78 = scmp.ne.s32.totalorder %s64, %s65
      %p79 = scmp.eq.s32.totalorder %s17, 3
      %p80 = por %p78, %p79
      %p82 = scmp.ne.s32.totalorder %s65, %s81
      %p83 = scmp.eq.s32.totalorder %s17, 0
      %p84 = por %p82, %p83
      %s85 = ssub.s32 %s18, %s30
      %p86 = scmp.eq.s32.totalorder %s85, 0
      %s88 = sadd.s32 %s87, 1
      %s89 = scalar_select %p86, %s87, %s88
      %p92 = pneg %p86
      %p93 = scmp.eq.s32.totalorder %s11, 3
      %p94 = por %p92, %p93
      %p95 = scmp.ne.s32.totalorder %s87, %s90
      %p96 = scmp.eq.s32.totalorder %s11, 0
      %p97 = por %p95, %p96
      %p98 = scmp.ne.s32.totalorder %s87, %s90
      %p99 = scmp.eq.s32.totalorder %s16, 3
      %p100 = por %p98, %p99
      %p101 = scmp.ne.s32.totalorder %s90, %s91
      %p102 = scmp.eq.s32.totalorder %s16, 0
      %p103 = por %p101, %p102
      %p104 = scmp.ne.s32.totalorder %s90, %s91
      %p105 = scmp.eq.s32.totalorder %s17, 3
      %p106 = por %p104, %p105
      %p108 = scmp.ne.s32.totalorder %s91, %s107
      %p109 = scmp.eq.s32.totalorder %s17, 0
      %p110 = por %p108, %p109
      %s111 = ssub.s32 %s18, %s30
      %p112 = scmp.eq.s32.totalorder %s111, 0
      %s114 = sadd.s32 %s113, 1
      %s115 = scalar_select %p112, %s113, %s114
      %p118 = pneg %p112
      %p119 = scmp.eq.s32.totalorder %s11, 3
      %p120 = por %p118, %p119
      %p121 = scmp.ne.s32.totalorder %s113, %s116
      %p122 = scmp.eq.s32.totalorder %s11, 0
      %p123 = por %p121, %p122
      %p124 = scmp.ne.s32.totalorder %s113, %s116
      %p125 = scmp.eq.s32.totalorder %s16, 3
      %p126 = por %p124, %p125
      %p127 = scmp.ne.s32.totalorder %s116, %s117
      %p128 = scmp.eq.s32.totalorder %s16, 0
      %p129 = por %p127, %p128
      %p130 = scmp.ne.s32.totalorder %s116, %s117
      %p131 = scmp.eq.s32.totalorder %s17, 3
      %p132 = por %p130, %p131
      %p134 = scmp.ne.s32.totalorder %s117, %s133
      %p135 = scmp.eq.s32.totalorder %s17, 0
      %p136 = por %p134, %p135
      %s137 = ssub.s32 %s18, %s30
      %p138 = scmp.eq.s32.totalorder %s137, 0
      %s140 = sadd.s32 %s139, 1
      %s141 = scalar_select %p138, %s139, %s140
      %p144 = pneg %p138
      %p145 = scmp.eq.s32.totalorder %s11, 3
      %p146 = por %p144, %p145
      %p147 = scmp.ne.s32.totalorder %s139, %s142
      %p148 = scmp.eq.s32.totalorder %s11, 0
      %p149 = por %p147, %p148
      %p150 = scmp.ne.s32.totalorder %s139, %s142
      %p151 = scmp.eq.s32.totalorder %s16, 3
      %p152 = por %p150, %p151
      %p153 = scmp.ne.s32.totalorder %s142, %s143
      %p154 = scmp.eq.s32.totalorder %s16, 0
      %p155 = por %p153, %p154
      %p156 = scmp.ne.s32.totalorder %s142, %s143
      %p157 = scmp.eq.s32.totalorder %s17, 3
      %p158 = por %p156, %p157
      %p160 = scmp.ne.s32.totalorder %s143, %s159
      %p161 = scmp.eq.s32.totalorder %s17, 0
      %p162 = por %p160, %p161
      %p163 = scmp.le.s32.totalorder 1, %s11
      %p164 = scmp.lt.s32.totalorder %s11, 5
      %p165 = pnand %p163, %p164
      %p166 = pneg %p165
      // Predicated region
      $region9: #{lightgcn_forward.3} parent=5 // pred_check
        _
      $region10: #{lightgcn_forward.3} parent=5 // pred_check_branch
        %168 = sbr.rel (%p165) target = $region12
      $region11: #{lightgcn_forward.3} parent=5 // pred_region
        %s169 = ssub.s32 %s11, 1
      $region12: #{lightgcn_forward.3} parent=5 // pred_fallthru
        _
      %p170 = scmp.lt.s32.totalorder %s11, 4
      // Predicated region
      $region13: #{lightgcn_forward.3} parent=5 // pred_check
        %p171 = pneg %p170
      $region14: #{lightgcn_forward.3} parent=5 // pred_check_branch
        %173 = sbr.rel (%p171) target = $region16
      $region15: #{lightgcn_forward.3} parent=5 // pred_region
        // Predicated region
        $region17: #{lightgcn_forward.3} parent=15 // pred_check
          %p174 = pneg %p45
        $region18: #{lightgcn_forward.3} parent=15 // pred_check_branch
          %176 = sbr.rel (%p174) target = $region20
        $region19: #{lightgcn_forward.3} parent=15 // pred_region
          %s177 = sand.u32 %s35, 1
          %s178 = sand.u32 %s35, 1
          %s179 = smul.addr %s178, 64
          %s180 = scalar_lea.vmem [#allocation3], %s179
          %s181 = smul.u32 16, %s18
          %s182 = smul.addr %s181, 2
          %s183 = sadd.s32 %s19, %s182
          %s184 = smul.addr %s183, 4
          %s185 = scalar_lea.vmem %s0, %s184
          // Predicated region
          $region21: #{lightgcn_forward.3} parent=19 // pred_check
            _
          $region22: #{lightgcn_forward.3} parent=19 // pred_check_branch
            %187 = sbr.rel (0) target = $region24
          $region23: #{lightgcn_forward.3} parent=19 // pred_region
            // Predicated region
            $region25: #{lightgcn_forward.3} parent=23 // pred_check
              _
            $region26: #{lightgcn_forward.3} parent=23 // pred_check_branch
              %189 = sbr.rel target = $region28
            $region27: #{lightgcn_forward.3} parent=23 // pred_region
              // Predicated region
              $region40: #{lightgcn_forward.3} parent=27 // pred_check
                _
              $region41: #{lightgcn_forward.3} parent=27 // pred_check_branch
                %235 = sbr.rel (0) target = $region43
              $region42: #{lightgcn_forward.3} parent=27 // pred_region
                loop: start=0, step=1, limit=1
                $region44: #{lightgcn_forward.3} parent=42 // loop_pre_header
                  _
                $region45: #{lightgcn_forward.3} parent=42 // loop_header
                  %s237 = sphi 0, %s241
                  %p238 = scmp.ge.s32.totalorder %s237, 1
                  %s242 = sphi %s185, %s185
                  %s243 = sphi %s180, %s180
                $region46: #{lightgcn_forward.3} parent=42 // loop_header_branch
                  %240 = sbr.rel (%p238) target = $region50
                $region47: #{lightgcn_forward.3} parent=42 // loop_body
                  _
                $region48: #{lightgcn_forward.3} parent=42 // loop_footer
                  %s241 = sadd.s32 1, %s237
                $region49: #{lightgcn_forward.3} parent=42 // loop_footer_branch
                  %236 = sbr.rel target = $region45
                $region50: #{lightgcn_forward.3} parent=42 // loop_exit
                  _
                %s245 = ssub.s32 16, 1
                loop: start=0, step=1, limit=1
                $region51: #{lightgcn_forward.3} parent=42 // loop_pre_header
                  _
                $region52: #{lightgcn_forward.3} parent=42 // loop_header
                  %s247 = sphi 0, %s251
                  %p248 = scmp.ge.s32.totalorder %s247, 1
                  %s252 = sphi %s185, %s185
                  %s253 = sphi %s180, %s180
                $region53: #{lightgcn_forward.3} parent=42 // loop_header_branch
                  %250 = sbr.rel (%p248) target = $region57
                $region54: #{lightgcn_forward.3} parent=42 // loop_body
                  %v254 = vld [vmem:[%s252] sm:%s245]
                  %255 = vst [vmem:[%s253] sm:%s245] %v254
                  %v256 = vld [vmem:[%s252 + $0x8] sm:%s245]
                  %257 = vst [vmem:[%s253 + $0x4] sm:%s245] %v256
                  %v258 = vld [vmem:[%s252 + $0x10] sm:%s245]
                  %259 = vst [vmem:[%s253 + $0x8] sm:%s245] %v258
                  %v260 = vld [vmem:[%s252 + $0x18] sm:%s245]
                  %261 = vst [vmem:[%s253 + $0xc] sm:%s245] %v260
                  %v262 = vld [vmem:[%s252 + $0x20] sm:%s245]
                  %263 = vst [vmem:[%s253 + $0x10] sm:%s245] %v262
                  %v264 = vld [vmem:[%s252 + $0x28] sm:%s245]
                  %265 = vst [vmem:[%s253 + $0x14] sm:%s245] %v264
                  %v266 = vld [vmem:[%s252 + $0x30] sm:%s245]
                  %267 = vst [vmem:[%s253 + $0x18] sm:%s245] %v266
                  %v268 = vld [vmem:[%s252 + $0x38] sm:%s245]
                  %269 = vst [vmem:[%s253 + $0x1c] sm:%s245] %v268
                  %v270 = vld [vmem:[%s252 + $0x40] sm:%s245]
                  %271 = vst [vmem:[%s253 + $0x20] sm:%s245] %v270
                  %v272 = vld [vmem:[%s252 + $0x48] sm:%s245]
                  %273 = vst [vmem:[%s253 + $0x24] sm:%s245] %v272
                  %v274 = vld [vmem:[%s252 + $0x50] sm:%s245]
                  %275 = vst [vmem:[%s253 + $0x28] sm:%s245] %v274
                  %v276 = vld [vmem:[%s252 + $0x58] sm:%s245]
                  %277 = vst [vmem:[%s253 + $0x2c] sm:%s245] %v276
                  %v278 = vld [vmem:[%s252 + $0x60] sm:%s245]
                  %279 = vst [vmem:[%s253 + $0x30] sm:%s245] %v278
                  %v280 = vld [vmem:[%s252 + $0x68] sm:%s245]
                  %281 = vst [vmem:[%s253 + $0x34] sm:%s245] %v280
                  %v282 = vld [vmem:[%s252 + $0x70] sm:%s245]
                  %283 = vst [vmem:[%s253 + $0x38] sm:%s245] %v282
                  %v284 = vld [vmem:[%s252 + $0x78] sm:%s245]
                  %285 = vst [vmem:[%s253 + $0x3c] sm:%s245] %v284
                $region55: #{lightgcn_forward.3} parent=42 // loop_footer
                  %s251 = sadd.s32 1, %s247
                $region56: #{lightgcn_forward.3} parent=42 // loop_footer_branch
                  %246 = sbr.rel target = $region52
                $region57: #{lightgcn_forward.3} parent=42 // loop_exit
                  _
              $region43: #{lightgcn_forward.3} parent=27 // pred_fallthru
                _
            $region28: #{lightgcn_forward.3} parent=23 // pred_fallthru
              _
            // Predicated region
            $region29: #{lightgcn_forward.3} parent=23 // pred_check
              _
            $region30: #{lightgcn_forward.3} parent=23 // pred_check_branch
              %191 = sbr.rel (0) target = $region32
            $region31: #{lightgcn_forward.3} parent=23 // pred_region
              %s193 = ssub.s32 16, 1
              loop: start=0, step=1, limit=1
              $region33: #{lightgcn_forward.3} parent=31 // loop_pre_header
                _
              $region34: #{lightgcn_forward.3} parent=31 // loop_header
                %s195 = sphi 0, %s199
                %p196 = scmp.ge.s32.totalorder %s195, 1
                %s200 = sphi %s185, %s185
                %s201 = sphi %s180, %s180
              $region35: #{lightgcn_forward.3} parent=31 // loop_header_branch
                %198 = sbr.rel (%p196) target = $region39
              $region36: #{lightgcn_forward.3} parent=31 // loop_body
                %v202 = vld [vmem:[%s200] sm:%s193]
                %203 = vst [vmem:[%s201] sm:%s193] %v202
                %v204 = vld [vmem:[%s200 + $0x8] sm:%s193]
                %205 = vst [vmem:[%s201 + $0x4] sm:%s193] %v204
                %v206 = vld [vmem:[%s200 + $0x10] sm:%s193]
                %207 = vst [vmem:[%s201 + $0x8] sm:%s193] %v206
                %v208 = vld [vmem:[%s200 + $0x18] sm:%s193]
                %209 = vst [vmem:[%s201 + $0xc] sm:%s193] %v208
                %v210 = vld [vmem:[%s200 + $0x20] sm:%s193]
                %211 = vst [vmem:[%s201 + $0x10] sm:%s193] %v210
                %v212 = vld [vmem:[%s200 + $0x28] sm:%s193]
                %213 = vst [vmem:[%s201 + $0x14] sm:%s193] %v212
                %v214 = vld [vmem:[%s200 + $0x30] sm:%s193]
                %215 = vst [vmem:[%s201 + $0x18] sm:%s193] %v214
                %v216 = vld [vmem:[%s200 + $0x38] sm:%s193]
                %217 = vst [vmem:[%s201 + $0x1c] sm:%s193] %v216
                %v218 = vld [vmem:[%s200 + $0x40] sm:%s193]
                %219 = vst [vmem:[%s201 + $0x20] sm:%s193] %v218
                %v220 = vld [vmem:[%s200 + $0x48] sm:%s193]
                %221 = vst [vmem:[%s201 + $0x24] sm:%s193] %v220
                %v222 = vld [vmem:[%s200 + $0x50] sm:%s193]
                %223 = vst [vmem:[%s201 + $0x28] sm:%s193] %v222
                %v224 = vld [vmem:[%s200 + $0x58] sm:%s193]
                %225 = vst [vmem:[%s201 + $0x2c] sm:%s193] %v224
                %v226 = vld [vmem:[%s200 + $0x60] sm:%s193]
                %227 = vst [vmem:[%s201 + $0x30] sm:%s193] %v226
                %v228 = vld [vmem:[%s200 + $0x68] sm:%s193]
                %229 = vst [vmem:[%s201 + $0x34] sm:%s193] %v228
                %v230 = vld [vmem:[%s200 + $0x70] sm:%s193]
                %231 = vst [vmem:[%s201 + $0x38] sm:%s193] %v230
                %v232 = vld [vmem:[%s200 + $0x78] sm:%s193]
                %233 = vst [vmem:[%s201 + $0x3c] sm:%s193] %v232
              $region37: #{lightgcn_forward.3} parent=31 // loop_footer
                %s199 = sadd.s32 1, %s195
              $region38: #{lightgcn_forward.3} parent=31 // loop_footer_branch
                %194 = sbr.rel target = $region34
              $region39: #{lightgcn_forward.3} parent=31 // loop_exit
                _
            $region32: #{lightgcn_forward.3} parent=23 // pred_fallthru
              _
          $region24: #{lightgcn_forward.3} parent=19 // pred_fallthru
            _
          %286 = vnop
        $region20: #{lightgcn_forward.3} parent=15 // pred_fallthru
          _
        // Predicated region
        $region58: #{lightgcn_forward.3} parent=15 // pred_check
          %p287 = pneg %p71
        $region59: #{lightgcn_forward.3} parent=15 // pred_check_branch
          %289 = sbr.rel (%p287) target = $region61
        $region60: #{lightgcn_forward.3} parent=15 // pred_region
          %s290 = smul.u32 16, %s19
          %p291 = scmp.lt.s32.totalorder %s290, 31
          %s292 = scalar_select %p291, %s290, 31
          %s293 = smul.addr %s292, 4
          %s294 = scalar_lea.vmem %s1, %s293
          %s295 = smul.u32 16, %s19
        $region61: #{lightgcn_forward.3} parent=15 // pred_fallthru
          _
        // Predicated region
        $region62: #{lightgcn_forward.3} parent=15 // pred_check
          %p296 = pneg %p97
        $region63: #{lightgcn_forward.3} parent=15 // pred_check_branch
          %298 = sbr.rel (%p296) target = $region65
        $region64: #{lightgcn_forward.3} parent=15 // pred_region
          %s299 = smul.u32 16, %s18
          %p300 = scmp.lt.s32.totalorder %s299, 31
          %s301 = scalar_select %p300, %s299, 31
          %s302 = smul.addr %s301, 8
          %s303 = scalar_lea.vmem %s2, %s302
          %s304 = smul.u32 16, %s18
        $region65: #{lightgcn_forward.3} parent=15 // pred_fallthru
          _
      $region16: #{lightgcn_forward.3} parent=5 // pred_fallthru
        _
      %p305 = scmp.le.s32.totalorder 1, %s11
      %p306 = scmp.lt.s32.totalorder %s11, 5
      %p307 = pnand %p305, %p306
      %p308 = pneg %p307
      // Predicated region
      $region66: #{lightgcn_forward.3} parent=5 // pred_check
        _
      $region67: #{lightgcn_forward.3} parent=5 // pred_check_branch
        %310 = sbr.rel (%p307) target = $region69
      $region68: #{lightgcn_forward.3} parent=5 // pred_region
        %s311 = ssub.s32 %s11, 1
        %s312 = sand.u32 %s38, 1
        %s313 = sand.u32 %s38, 1
        %s314 = smul.addr %s313, 64
        %s315 = scalar_lea.vmem [#allocation3], %s314
        // Predicated region
        $region70: #{lightgcn_forward.3} parent=68 // pred_check
          %p316 = pneg %p51
        $region71: #{lightgcn_forward.3} parent=68 // pred_check_branch
          %318 = sbr.rel (%p316) target = $region73
        $region72: #{lightgcn_forward.3} parent=68 // pred_region
          _
        $region73: #{lightgcn_forward.3} parent=68 // pred_fallthru
          _
        %s319 = sand.u32 %s38, 1
        %s320 = sand.u32 %s38, 1
        %s321 = smul.addr %s320, 64
        %s322 = scalar_lea.vmem [#allocation3], %s321
        %p323 = pneg %p51
        %p324 = pneg %p48
        %s325 = smul.u32 16, %s21
        %p326 = scmp.lt.s32.totalorder %s325, 31
        %s327 = scalar_select %p326, %s325, 31
        %s328 = smul.addr %s327, 4
        %s329 = scalar_lea.vmem %s1, %s328
        %p330 = pneg %p77
        %p331 = pneg %p74
        %s332 = smul.u32 16, %s20
        %p333 = scmp.lt.s32.totalorder %s332, 31
        %s334 = scalar_select %p333, %s332, 31
        %s335 = smul.addr %s334, 8
        %s336 = scalar_lea.vmem %s2, %s335
        %p337 = pneg %p103
        %p338 = pneg %p100
        %p339 = pneg %p129
        %p340 = pneg %p126
        %s341 = smul.u32 16, %s20
        %p342 = scmp.lt.s32.totalorder %s341, 31
        %s343 = scalar_select %p342, %s341, 31
        %s344 = smul.addr %s343, 4
        %s345 = scalar_lea.vmem %s3, %s344
        %p346 = pneg %p155
        %p347 = pneg %p152
        %s348 = smul.u32 16, %s20
        %p349 = scmp.lt.s32.totalorder %s348, 31
        %s350 = scalar_select %p349, %s348, 31
        %s351 = smul.addr %s350, 8
        %s352 = scalar_lea.vmem %s4, %s351
        %s353 = smul.u32 16, %s20
        %s354 = smul.u32 16, %s21
        %p355 = scmp.lt.s32.totalorder %s354, 31
        %s356 = scalar_select %p355, %s354, 31
        %s357 = smul.addr %s356, 4
        %s358 = scalar_lea.vmem %s1, %s357
        %s359 = smul.u32 16, %s21
        %s360 = smul.u32 16, %s20
        %p361 = scmp.lt.s32.totalorder %s360, 31
        %s362 = scalar_select %p361, %s360, 31
        %s363 = smul.addr %s362, 8
        %s364 = scalar_lea.vmem %s2, %s363
        %s365 = smul.u32 16, %s20
        %s366 = smul.u32 16, %s20
        %p367 = scmp.lt.s32.totalorder %s366, 31
        %s368 = scalar_select %p367, %s366, 31
        %s369 = smul.addr %s368, 4
        %s370 = scalar_lea.vmem %s3, %s369
        %s371 = smul.u32 16, %s20
        %s372 = smul.u32 16, %s20
        %p373 = scmp.lt.s32.totalorder %s372, 31
        %s374 = scalar_select %p373, %s372, 31
        %s375 = smul.addr %s374, 8
        %s376 = scalar_lea.vmem %s4, %s375
        %s377 = smul.u32 16, %s20
        %p379 = scmp.eq.s32.totalorder %s21, 0
        // Predicated region
        $region74: #{lightgcn_forward.3} parent=68 // pred_check
          %p380 = pneg %p379
        $region75: #{lightgcn_forward.3} parent=68 // pred_check_branch
          %382 = sbr.rel (%p380) target = $region77
        $region76: #{lightgcn_forward.3} parent=68 // pred_region
          %vm383 = vcmask 261120
          %384 = vst.msk [vmem:[#allocation2] sm:$0xff] %vm383, 0.0
          %385 = vst.msk [vmem:[#allocation2 + $0x8] sm:$0xff] %vm383, 0.0
          %386 = vst.msk [vmem:[#allocation2 + $0x10] sm:$0xff] %vm383, 0.0
          %387 = vst.msk [vmem:[#allocation2 + $0x18] sm:$0xff] %vm383, 0.0
          %388 = vst.msk [vmem:[#allocation2 + $0x20] sm:$0xff] %vm383, 0.0
          %389 = vst.msk [vmem:[#allocation2 + $0x28] sm:$0xff] %vm383, 0.0
          %390 = vst.msk [vmem:[#allocation2 + $0x30] sm:$0xff] %vm383, 0.0
          %391 = vst.msk [vmem:[#allocation2 + $0x38] sm:$0xff] %vm383, 0.0
          %392 = vst.msk [vmem:[#allocation2 + $0x40] sm:$0xff] %vm383, 0.0
          %393 = vst.msk [vmem:[#allocation2 + $0x48] sm:$0xff] %vm383, 0.0
          %394 = vst.msk [vmem:[#allocation2 + $0x50] sm:$0xff] %vm383, 0.0
          %395 = vst.msk [vmem:[#allocation2 + $0x58] sm:$0xff] %vm383, 0.0
          %396 = vst.msk [vmem:[#allocation2 + $0x60] sm:$0xff] %vm383, 0.0
          %397 = vst.msk [vmem:[#allocation2 + $0x68] sm:$0xff] %vm383, 0.0
          %398 = vst.msk [vmem:[#allocation2 + $0x70] sm:$0xff] %vm383, 0.0
          %399 = vst.msk [vmem:[#allocation2 + $0x78] sm:$0xff] %vm383, 0.0
        $region77: #{lightgcn_forward.3} parent=68 // pred_fallthru
          _
        %v400 = vld [vmem:[#allocation2] sm:$0xff]
        %v401 = vld [vmem:[#allocation2 + $0x8] sm:$0xff]
        %v402 = vld [vmem:[#allocation2 + $0x10] sm:$0xff]
        %v403 = vld [vmem:[#allocation2 + $0x18] sm:$0xff]
        %v404 = vld [vmem:[#allocation2 + $0x20] sm:$0xff]
        %v405 = vld [vmem:[#allocation2 + $0x28] sm:$0xff]
        %v406 = vld [vmem:[#allocation2 + $0x30] sm:$0xff]
        %v407 = vld [vmem:[#allocation2 + $0x38] sm:$0xff]
        %v408 = vld [vmem:[#allocation2 + $0x40] sm:$0xff]
        %v409 = vld [vmem:[#allocation2 + $0x48] sm:$0xff]
        %v410 = vld [vmem:[#allocation2 + $0x50] sm:$0xff]
        %v411 = vld [vmem:[#allocation2 + $0x58] sm:$0xff]
        %v412 = vld [vmem:[#allocation2 + $0x60] sm:$0xff]
        %v413 = vld [vmem:[#allocation2 + $0x68] sm:$0xff]
        %v414 = vld [vmem:[#allocation2 + $0x70] sm:$0xff]
        %v415 = vld [vmem:[#allocation2 + $0x78] sm:$0xff]
        %v416 = vld [vmem:[%s315] sm:$0xf]
        %v417 = vld [vmem:[%s315 + $0x4] sm:$0xf]
        %v418 = vld [vmem:[%s315 + $0x8] sm:$0xf]
        %v419 = vld [vmem:[%s315 + $0xc] sm:$0xf]
        %v420 = vld [vmem:[%s315 + $0x10] sm:$0xf]
        %v421 = vld [vmem:[%s315 + $0x14] sm:$0xf]
        %v422 = vld [vmem:[%s315 + $0x18] sm:$0xf]
        %v423 = vld [vmem:[%s315 + $0x1c] sm:$0xf]
        %v424 = vld [vmem:[%s315 + $0x20] sm:$0xf]
        %v425 = vld [vmem:[%s315 + $0x24] sm:$0xf]
        %v426 = vld [vmem:[%s315 + $0x28] sm:$0xf]
        %v427 = vld [vmem:[%s315 + $0x2c] sm:$0xf]
        %v428 = vld [vmem:[%s315 + $0x30] sm:$0xf]
        %v429 = vld [vmem:[%s315 + $0x34] sm:$0xf]
        %v430 = vld [vmem:[%s315 + $0x38] sm:$0xf]
        %v431 = vld [vmem:[%s315 + $0x3c] sm:$0xf]
        %v432 = vld [vmem:[%s358] sm:$0xf]
        %v433 = vld [vmem:[%s358 + $0x4] sm:$0xf]
        %v434 = vld [vmem:[%s358 + $0x8] sm:$0xf]
        %v435 = vld [vmem:[%s358 + $0xc] sm:$0xf]
        %v436 = vld [vmem:[%s358 + $0x10] sm:$0xf]
        %v437 = vld [vmem:[%s358 + $0x14] sm:$0xf]
        %v438 = vld [vmem:[%s358 + $0x18] sm:$0xf]
        %v439 = vld [vmem:[%s358 + $0x1c] sm:$0xf]
        %v440 = vld [vmem:[%s358 + $0x20] sm:$0xf]
        %v441 = vld [vmem:[%s358 + $0x24] sm:$0xf]
        %v442 = vld [vmem:[%s358 + $0x28] sm:$0xf]
        %v443 = vld [vmem:[%s358 + $0x2c] sm:$0xf]
        %v444 = vld [vmem:[%s358 + $0x30] sm:$0xf]
        %v445 = vld [vmem:[%s358 + $0x34] sm:$0xf]
        %v446 = vld [vmem:[%s358 + $0x38] sm:$0xf]
        %v447 = vld [vmem:[%s358 + $0x3c] sm:$0xf]
        %v464 = vunpack.c.l.b16 %v416
        %v465 = vunpack.c.l.b16 %v417
        %v466 = vunpack.c.l.b16 %v418
        %v467 = vunpack.c.l.b16 %v419
        %v468 = vunpack.c.l.b16 %v420
        %v469 = vunpack.c.l.b16 %v421
        %v470 = vunpack.c.l.b16 %v422
        %v471 = vunpack.c.l.b16 %v423
        %v472 = vunpack.c.l.b16 %v424
        %v473 = vunpack.c.l.b16 %v425
        %v474 = vunpack.c.l.b16 %v426
        %v475 = vunpack.c.l.b16 %v427
        %v476 = vunpack.c.l.b16 %v428
        %v477 = vunpack.c.l.b16 %v429
        %v478 = vunpack.c.l.b16 %v430
        %v479 = vunpack.c.l.b16 %v431
        %v480 = vpack.c.b16 %v465, %v464
        %v481 = vpack.c.b16 %v467, %v466
        %v482 = vpack.c.b16 %v469, %v468
        %v483 = vpack.c.b16 %v471, %v470
        %v484 = vpack.c.b16 %v473, %v472
        %v485 = vpack.c.b16 %v475, %v474
        %v486 = vpack.c.b16 %v477, %v476
        %v487 = vpack.c.b16 %v479, %v478
        %v512 = vunpack.c.l.b16 %v432
        %v513 = vunpack.c.l.b16 %v433
        %v514 = vunpack.c.l.b16 %v434
        %v515 = vunpack.c.l.b16 %v435
        %v516 = vunpack.c.l.b16 %v436
        %v517 = vunpack.c.l.b16 %v437
        %v518 = vunpack.c.l.b16 %v438
        %v519 = vunpack.c.l.b16 %v439
        %v520 = vunpack.c.l.b16 %v440
        %v521 = vunpack.c.l.b16 %v441
        %v522 = vunpack.c.l.b16 %v442
        %v523 = vunpack.c.l.b16 %v443
        %v524 = vunpack.c.l.b16 %v444
        %v525 = vunpack.c.l.b16 %v445
        %v526 = vunpack.c.l.b16 %v446
        %v527 = vunpack.c.l.b16 %v447
        %v528 = vpack.c.b16 %v513, %v512
        %v529 = vpack.c.b16 %v515, %v514
        %v530 = vpack.c.b16 %v517, %v516
        %v531 = vpack.c.b16 %v519, %v518
        %v532 = vpack.c.b16 %v521, %v520
        %v533 = vpack.c.b16 %v523, %v522
        %v534 = vpack.c.b16 %v525, %v524
        %v535 = vpack.c.b16 %v527, %v526
        %544 = vmatprep.subr.bf16.mxu0 0
        %545 = vmatpush1.bf16.msra.mxu0 %v535
        %546 = vmatprep.subr.bf16.mxu0 0
        %547 = vmatpush1.bf16.msra.mxu0 %v534
        %548 = vmatprep.subr.bf16.mxu0 0
        %549 = vmatpush1.bf16.msra.mxu0 %v533
        %550 = vmatprep.subr.bf16.mxu0 0
        %551 = vmatpush1.bf16.msra.mxu0 %v532
        %552 = vmatprep.subr.bf16.mxu0 0
        %553 = vmatpush1.bf16.msra.mxu0 %v531
        %554 = vmatprep.subr.bf16.mxu0 0
        %555 = vmatpush1.bf16.msra.mxu0 %v530
        %556 = vmatprep.subr.bf16.mxu0 0
        %557 = vmatpush1.bf16.msra.mxu0 %v529
        %558 = vmatprep.subr.bf16.mxu0 0
        %559 = vmatpush1.bf16.msra.mxu0 %v528
        %560 = vmatprep.subr.bf16.mxu0 0
        %561 = vmatpush2.bf16.msra.mxu0 0
        %562 = vmatprep.subr.bf16.mxu0 0
        %563 = vmatpush2.bf16.msra.mxu0 0
        %564 = vmatprep.subr.bf16.mxu0 0
        %565 = vmatpush2.bf16.msra.mxu0 0
        %566 = vmatprep.subr.bf16.mxu0 0
        %567 = vmatpush2.bf16.msra.mxu0 0
        %568 = vmatprep.subr.bf16.mxu0 0
        %569 = vmatpush2.bf16.msra.mxu0 0
        %570 = vmatprep.subr.bf16.mxu0 0
        %571 = vmatpush2.bf16.msra.mxu0 0
        %572 = vmatprep.subr.bf16.mxu0 0
        %573 = vmatpush2.bf16.msra.mxu0 0
        %574 = vmatprep.subr.bf16.mxu0 0
        %575 = vmatpush2.bf16.msra.mxu0 0
        %576 = vmatprep.mubr.bf16.mxu0 0
        %577 = vmatmul.mubr.bf16.gmra.mxu0 %v480
        %v578 = vpop.f32.mrf.mxu0
        %v579 = vadd.f32 0.0, %v578
        %v580 = vpop.f32.mrf.mxu0
        %v581 = vpop.f32.mrf.mxu0
        %v582 = vadd.f32 0.0, %v581
        %v583 = vpop.f32.mrf.mxu0
        %584 = vmatprep.mubr.bf16.mxu0 0
        %585 = vmatmul.mubr.bf16.gmra.mxu0 %v481
        %v586 = vpop.f32.mrf.mxu0
        %v587 = vadd.f32 0.0, %v586
        %v588 = vpop.f32.mrf.mxu0
        %v589 = vpop.f32.mrf.mxu0
        %v590 = vadd.f32 0.0, %v589
        %v591 = vpop.f32.mrf.mxu0
        %592 = vmatprep.mubr.bf16.mxu0 0
        %593 = vmatmul.mubr.bf16.gmra.mxu0 %v482
        %v594 = vpop.f32.mrf.mxu0
        %v595 = vadd.f32 0.0, %v594
        %v596 = vpop.f32.mrf.mxu0
        %v597 = vpop.f32.mrf.mxu0
        %v598 = vadd.f32 0.0, %v597
        %v599 = vpop.f32.mrf.mxu0
        %600 = vmatprep.mubr.bf16.mxu0 0
        %601 = vmatmul.mubr.bf16.gmra.mxu0 %v483
        %v602 = vpop.f32.mrf.mxu0
        %v603 = vadd.f32 0.0, %v602
        %v604 = vpop.f32.mrf.mxu0
        %v605 = vpop.f32.mrf.mxu0
        %v606 = vadd.f32 0.0, %v605
        %v607 = vpop.f32.mrf.mxu0
        %608 = vmatprep.mubr.bf16.mxu0 0
        %609 = vmatmul.mubr.bf16.gmra.mxu0 %v484
        %v610 = vpop.f32.mrf.mxu0
        %v611 = vadd.f32 0.0, %v610
        %v612 = vpop.f32.mrf.mxu0
        %v613 = vpop.f32.mrf.mxu0
        %v614 = vadd.f32 0.0, %v613
        %v615 = vpop.f32.mrf.mxu0
        %616 = vmatprep.mubr.bf16.mxu0 0
        %617 = vmatmul.mubr.bf16.gmra.mxu0 %v485
        %v618 = vpop.f32.mrf.mxu0
        %v619 = vadd.f32 0.0, %v618
        %v620 = vpop.f32.mrf.mxu0
        %v621 = vpop.f32.mrf.mxu0
        %v622 = vadd.f32 0.0, %v621
        %v623 = vpop.f32.mrf.mxu0
        %624 = vmatprep.mubr.bf16.mxu0 0
        %625 = vmatmul.mubr.bf16.gmra.mxu0 %v486
        %v626 = vpop.f32.mrf.mxu0
        %v627 = vadd.f32 0.0, %v626
        %v628 = vpop.f32.mrf.mxu0
        %v629 = vpop.f32.mrf.mxu0
        %v630 = vadd.f32 0.0, %v629
        %v631 = vpop.f32.mrf.mxu0
        %632 = vmatprep.mubr.bf16.mxu0 0
        %633 = vmatmul.mubr.bf16.gmra.mxu0 %v487
        %v634 = vpop.f32.mrf.mxu0
        %v635 = vadd.f32 0.0, %v634
        %v636 = vpop.f32.mrf.mxu0
        %v637 = vpop.f32.mrf.mxu0
        %v638 = vadd.f32 0.0, %v637
        %v639 = vpop.f32.mrf.mxu0
        %640 = vdwg.mxu0
        %v641 = vadd.f32 %v400, %v579
        %v642 = vadd.f32 %v401, %v582
        %v643 = vadd.f32 %v402, %v587
        %v644 = vadd.f32 %v403, %v590
        %v645 = vadd.f32 %v404, %v595
        %v646 = vadd.f32 %v405, %v598
        %v647 = vadd.f32 %v406, %v603
        %v648 = vadd.f32 %v407, %v606
        %v649 = vadd.f32 %v408, %v611
        %v650 = vadd.f32 %v409, %v614
        %v651 = vadd.f32 %v410, %v619
        %v652 = vadd.f32 %v411, %v622
        %v653 = vadd.f32 %v412, %v627
        %v654 = vadd.f32 %v413, %v630
        %v655 = vadd.f32 %v414, %v635
        %v656 = vadd.f32 %v415, %v638
        %vm657 = vcmask 261120
        %658 = vst.msk [vmem:[#allocation2] sm:$0xff] %vm657, %v641
        %659 = vst.msk [vmem:[#allocation2 + $0x8] sm:$0xff] %vm657, %v642
        %660 = vst.msk [vmem:[#allocation2 + $0x10] sm:$0xff] %vm657, %v643
        %661 = vst.msk [vmem:[#allocation2 + $0x18] sm:$0xff] %vm657, %v644
        %662 = vst.msk [vmem:[#allocation2 + $0x20] sm:$0xff] %vm657, %v645
        %663 = vst.msk [vmem:[#allocation2 + $0x28] sm:$0xff] %vm657, %v646
        %664 = vst.msk [vmem:[#allocation2 + $0x30] sm:$0xff] %vm657, %v647
        %665 = vst.msk [vmem:[#allocation2 + $0x38] sm:$0xff] %vm657, %v648
        %666 = vst.msk [vmem:[#allocation2 + $0x40] sm:$0xff] %vm657, %v649
        %667 = vst.msk [vmem:[#allocation2 + $0x48] sm:$0xff] %vm657, %v650
        %668 = vst.msk [vmem:[#allocation2 + $0x50] sm:$0xff] %vm657, %v651
        %669 = vst.msk [vmem:[#allocation2 + $0x58] sm:$0xff] %vm657, %v652
        %670 = vst.msk [vmem:[#allocation2 + $0x60] sm:$0xff] %vm657, %v653
        %671 = vst.msk [vmem:[#allocation2 + $0x68] sm:$0xff] %vm657, %v654
        %672 = vst.msk [vmem:[#allocation2 + $0x70] sm:$0xff] %vm657, %v655
        %673 = vst.msk [vmem:[#allocation2 + $0x78] sm:$0xff] %vm657, %v656
        %p674 = scmp.eq.s32.totalorder %s21, 1
        // Predicated region
        $region78: #{lightgcn_forward.3} parent=68 // pred_check
          %p675 = pneg %p674
        $region79: #{lightgcn_forward.3} parent=68 // pred_check_branch
          %677 = sbr.rel (%p675) target = $region81
        $region80: #{lightgcn_forward.3} parent=68 // pred_region
          %v678 = vld [vmem:[#allocation2] sm:$0xff]
          %v679 = vld [vmem:[#allocation2 + $0x8] sm:$0xff]
          %v680 = vld [vmem:[#allocation2 + $0x10] sm:$0xff]
          %v681 = vld [vmem:[#allocation2 + $0x18] sm:$0xff]
          %v682 = vld [vmem:[#allocation2 + $0x20] sm:$0xff]
          %v683 = vld [vmem:[#allocation2 + $0x28] sm:$0xff]
          %v684 = vld [vmem:[#allocation2 + $0x30] sm:$0xff]
          %v685 = vld [vmem:[#allocation2 + $0x38] sm:$0xff]
          %v686 = vld [vmem:[#allocation2 + $0x40] sm:$0xff]
          %v687 = vld [vmem:[#allocation2 + $0x48] sm:$0xff]
          %v688 = vld [vmem:[#allocation2 + $0x50] sm:$0xff]
          %v689 = vld [vmem:[#allocation2 + $0x58] sm:$0xff]
          %v690 = vld [vmem:[#allocation2 + $0x60] sm:$0xff]
          %v691 = vld [vmem:[#allocation2 + $0x68] sm:$0xff]
          %v692 = vld [vmem:[#allocation2 + $0x70] sm:$0xff]
          %v693 = vld [vmem:[#allocation2 + $0x78] sm:$0xff]
          %v694 = vpack.c.bf16 %v679, %v678
          %v695 = vpack.c.bf16 %v681, %v680
          %v696 = vpack.c.bf16 %v683, %v682
          %v697 = vpack.c.bf16 %v685, %v684
          %v698 = vpack.c.bf16 %v687, %v686
          %v699 = vpack.c.bf16 %v689, %v688
          %v700 = vpack.c.bf16 %v691, %v690
          %v701 = vpack.c.bf16 %v693, %v692
          %v710 = vunpack.c.l.b16 %v694
          %v711 = vunpack.c.h.b16 %v694
          %v712 = vunpack.c.l.b16 %v695
          %v713 = vunpack.c.h.b16 %v695
          %v714 = vunpack.c.l.b16 %v696
          %v715 = vunpack.c.h.b16 %v696
          %v716 = vunpack.c.l.b16 %v697
          %v717 = vunpack.c.h.b16 %v697
          %v718 = vunpack.c.l.b16 %v698
          %v719 = vunpack.c.h.b16 %v698
          %v720 = vunpack.c.l.b16 %v699
          %v721 = vunpack.c.h.b16 %v699
          %v722 = vunpack.c.l.b16 %v700
          %v723 = vunpack.c.h.b16 %v700
          %v724 = vunpack.c.l.b16 %v701
          %v725 = vunpack.c.h.b16 %v701
          %v726 = vpack.c.b16 %v710, %v710
          %v727 = vpack.c.b16 %v711, %v711
          %v728 = vpack.c.b16 %v712, %v712
          %v729 = vpack.c.b16 %v713, %v713
          %v730 = vpack.c.b16 %v714, %v714
          %v731 = vpack.c.b16 %v715, %v715
          %v732 = vpack.c.b16 %v716, %v716
          %v733 = vpack.c.b16 %v717, %v717
          %v734 = vpack.c.b16 %v718, %v718
          %v735 = vpack.c.b16 %v719, %v719
          %v736 = vpack.c.b16 %v720, %v720
          %v737 = vpack.c.b16 %v721, %v721
          %v738 = vpack.c.b16 %v722, %v722
          %v739 = vpack.c.b16 %v723, %v723
          %v740 = vpack.c.b16 %v724, %v724
          %v741 = vpack.c.b16 %v725, %v725
          %vm758 = vcmask 257024
          %759 = vst.msk [vmem:[%s370] sm:$0xf] %vm758, %v726
          %760 = vst.msk [vmem:[%s370 + $0x4] sm:$0xf] %vm758, %v727
          %761 = vst.msk [vmem:[%s370 + $0x8] sm:$0xf] %vm758, %v728
          %762 = vst.msk [vmem:[%s370 + $0xc] sm:$0xf] %vm758, %v729
          %763 = vst.msk [vmem:[%s370 + $0x10] sm:$0xf] %vm758, %v730
          %764 = vst.msk [vmem:[%s370 + $0x14] sm:$0xf] %vm758, %v731
          %765 = vst.msk [vmem:[%s370 + $0x18] sm:$0xf] %vm758, %v732
          %766 = vst.msk [vmem:[%s370 + $0x1c] sm:$0xf] %vm758, %v733
          %767 = vst.msk [vmem:[%s370 + $0x20] sm:$0xf] %vm758, %v734
          %768 = vst.msk [vmem:[%s370 + $0x24] sm:$0xf] %vm758, %v735
          %769 = vst.msk [vmem:[%s370 + $0x28] sm:$0xf] %vm758, %v736
          %770 = vst.msk [vmem:[%s370 + $0x2c] sm:$0xf] %vm758, %v737
          %771 = vst.msk [vmem:[%s370 + $0x30] sm:$0xf] %vm758, %v738
          %772 = vst.msk [vmem:[%s370 + $0x34] sm:$0xf] %vm758, %v739
          %773 = vst.msk [vmem:[%s370 + $0x38] sm:$0xf] %vm758, %v740
          %774 = vst.msk [vmem:[%s370 + $0x3c] sm:$0xf] %vm758, %v741
          %v775 = vld [vmem:[%s364] sm:$0xff]
          %v776 = vld [vmem:[%s364 + $0x8] sm:$0xff]
          %v777 = vld [vmem:[%s364 + $0x10] sm:$0xff]
          %v778 = vld [vmem:[%s364 + $0x18] sm:$0xff]
          %v779 = vld [vmem:[%s364 + $0x20] sm:$0xff]
          %v780 = vld [vmem:[%s364 + $0x28] sm:$0xff]
          %v781 = vld [vmem:[%s364 + $0x30] sm:$0xff]
          %v782 = vld [vmem:[%s364 + $0x38] sm:$0xff]
          %v783 = vld [vmem:[%s364 + $0x40] sm:$0xff]
          %v784 = vld [vmem:[%s364 + $0x48] sm:$0xff]
          %v785 = vld [vmem:[%s364 + $0x50] sm:$0xff]
          %v786 = vld [vmem:[%s364 + $0x58] sm:$0xff]
          %v787 = vld [vmem:[%s364 + $0x60] sm:$0xff]
          %v788 = vld [vmem:[%s364 + $0x68] sm:$0xff]
          %v789 = vld [vmem:[%s364 + $0x70] sm:$0xff]
          %v790 = vld [vmem:[%s364 + $0x78] sm:$0xff]
          %v791 = vadd.f32 %v775, %v678
          %v792 = vadd.f32 %v776, %v679
          %v793 = vadd.f32 %v777, %v680
          %v794 = vadd.f32 %v778, %v681
          %v795 = vadd.f32 %v779, %v682
          %v796 = vadd.f32 %v780, %v683
          %v797 = vadd.f32 %v781, %v684
          %v798 = vadd.f32 %v782, %v685
          %v799 = vadd.f32 %v783, %v686
          %v800 = vadd.f32 %v784, %v687
          %v801 = vadd.f32 %v785, %v688
          %v802 = vadd.f32 %v786, %v689
          %v803 = vadd.f32 %v787, %v690
          %v804 = vadd.f32 %v788, %v691
          %v805 = vadd.f32 %v789, %v692
          %v806 = vadd.f32 %v790, %v693
          %807 = vst.msk [vmem:[%s376] sm:$0xff] %vm657, %v791
          %808 = vst.msk [vmem:[%s376 + $0x8] sm:$0xff] %vm657, %v792
          %809 = vst.msk [vmem:[%s376 + $0x10] sm:$0xff] %vm657, %v793
          %810 = vst.msk [vmem:[%s376 + $0x18] sm:$0xff] %vm657, %v794
          %811 = vst.msk [vmem:[%s376 + $0x20] sm:$0xff] %vm657, %v795
          %812 = vst.msk [vmem:[%s376 + $0x28] sm:$0xff] %vm657, %v796
          %813 = vst.msk [vmem:[%s376 + $0x30] sm:$0xff] %vm657, %v797
          %814 = vst.msk [vmem:[%s376 + $0x38] sm:$0xff] %vm657, %v798
          %815 = vst.msk [vmem:[%s376 + $0x40] sm:$0xff] %vm657, %v799
          %816 = vst.msk [vmem:[%s376 + $0x48] sm:$0xff] %vm657, %v800
          %817 = vst.msk [vmem:[%s376 + $0x50] sm:$0xff] %vm657, %v801
          %818 = vst.msk [vmem:[%s376 + $0x58] sm:$0xff] %vm657, %v802
          %819 = vst.msk [vmem:[%s376 + $0x60] sm:$0xff] %vm657, %v803
          %820 = vst.msk [vmem:[%s376 + $0x68] sm:$0xff] %vm657, %v804
          %821 = vst.msk [vmem:[%s376 + $0x70] sm:$0xff] %vm657, %v805
          %822 = vst.msk [vmem:[%s376 + $0x78] sm:$0xff] %vm657, %v806
        $region81: #{lightgcn_forward.3} parent=68 // pred_fallthru
          _
        %s823 = smul.u32 16, %s20
        %p824 = scmp.lt.s32.totalorder %s823, 31
        %s825 = scalar_select %p824, %s823, 31
        %s826 = smul.addr %s825, 4
        %s827 = scalar_lea.vmem %s3, %s826
        %s828 = smul.u32 16, %s20
        %p829 = scmp.lt.s32.totalorder %s828, 31
        %s830 = scalar_select %p829, %s828, 31
        %s831 = smul.addr %s830, 8
        %s832 = scalar_lea.vmem %s4, %s831
        // Predicated region
        $region82: #{lightgcn_forward.3} parent=68 // pred_check
          %p833 = pneg %p126
        $region83: #{lightgcn_forward.3} parent=68 // pred_check_branch
          %835 = sbr.rel (%p833) target = $region85
        $region84: #{lightgcn_forward.3} parent=68 // pred_region
          %s836 = smul.u32 16, %s20
        $region85: #{lightgcn_forward.3} parent=68 // pred_fallthru
          _
        // Predicated region
        $region86: #{lightgcn_forward.3} parent=68 // pred_check
          %p837 = pneg %p152
        $region87: #{lightgcn_forward.3} parent=68 // pred_check_branch
          %839 = sbr.rel (%p837) target = $region89
        $region88: #{lightgcn_forward.3} parent=68 // pred_region
          %s840 = smul.u32 16, %s20
        $region89: #{lightgcn_forward.3} parent=68 // pred_fallthru
          _
      $region69: #{lightgcn_forward.3} parent=5 // pred_fallthru
        _
      %p841 = scmp.le.s32.totalorder 2, %s11
      // Predicated region
      $region90: #{lightgcn_forward.3} parent=5 // pred_check
        %p842 = pneg %p841
      $region91: #{lightgcn_forward.3} parent=5 // pred_check_branch
        %844 = sbr.rel (%p842) target = $region93
      $region92: #{lightgcn_forward.3} parent=5 // pred_region
        %s845 = ssub.s32 %s11, 2
        // Predicated region
        $region94: #{lightgcn_forward.3} parent=92 // pred_check
          %p846 = pneg %p132
        $region95: #{lightgcn_forward.3} parent=92 // pred_check_branch
          %848 = sbr.rel (%p846) target = $region97
        $region96: #{lightgcn_forward.3} parent=92 // pred_region
          %s849 = smul.u32 16, %s22
          %p850 = scmp.lt.s32.totalorder %s849, 31
          %s851 = scalar_select %p850, %s849, 31
          %s852 = smul.addr %s851, 4
          %s853 = scalar_lea.vmem %s3, %s852
        $region97: #{lightgcn_forward.3} parent=92 // pred_fallthru
          _
        // Predicated region
        $region98: #{lightgcn_forward.3} parent=92 // pred_check
          %p854 = pneg %p158
        $region99: #{lightgcn_forward.3} parent=92 // pred_check_branch
          %856 = sbr.rel (%p854) target = $region101
        $region100: #{lightgcn_forward.3} parent=92 // pred_region
          %s857 = smul.u32 16, %s22
          %p858 = scmp.lt.s32.totalorder %s857, 31
          %s859 = scalar_select %p858, %s857, 31
          %s860 = smul.addr %s859, 8
          %s861 = scalar_lea.vmem %s4, %s860
        $region101: #{lightgcn_forward.3} parent=92 // pred_fallthru
          _
      $region93: #{lightgcn_forward.3} parent=5 // pred_fallthru
        _
    $region6: #{lightgcn_forward.3} parent=1 // loop_footer
      %s15 = sadd.s32 1, %s11
    $region7: #{lightgcn_forward.3} parent=1 // loop_footer_branch
      %10 = sbr.rel target = $region3
    $region8: #{lightgcn_forward.3} parent=1 // loop_exit
      _

</llo_original>
